<compile_context>
chip_gen: v5e
topology: v5e:2x2
jax: 0.10.0
libtpu: 0.0.40
codegen_flags: <defaults>
</compile_context>

<pallas_src>
import jax
import jax.numpy as jnp
import numpy as np
from jax.experimental import pallas as pl
from jax.experimental.pallas import tpu as pltpu


def fold_bn(gamma, beta, running_mean, running_var, eps=1e-5):
    scale = gamma / jnp.sqrt(running_var + eps)
    bias = beta - running_mean * scale
    return scale, bias


def build_row_toeplitz(w_hwio, W):
    """(3,3,Ci,Co) HWIO conv weight -> (3, W*Ci, W*Co) block-Toeplitz matrices.

    B[ky, x*Ci+ci, w*Co+co] = w_hwio[ky, x-w+1, ci, co]  if 0 <= x-w+1 < 3 else 0
    so that   out[h, w*Co+co] = sum_ky  padH[h+ky, :] @ B[ky]
    reproduces a 3x3 SAME (zero-padded) cross-correlation. The W-boundary zero
    padding is implicit in the clipped band; the H-boundary padding comes from
    the two zero halo rows of the padded activation slab.
    """
    KH, KW, Ci, Co = w_hwio.shape
    x_idx = jnp.arange(W)[:, None]            # input column
    w_idx = jnp.arange(W)[None, :]            # output column
    kx = x_idx - w_idx + 1                    # (W, W)
    valid = (kx >= 0) & (kx < KW)
    kx_c = jnp.clip(kx, 0, KW - 1)
    g = w_hwio[:, kx_c, :, :]                 # (KH, W, W, Ci, Co)
    g = jnp.where(valid[None, :, :, None, None], g, 0.0)
    return jnp.transpose(g, (0, 1, 3, 2, 4)).reshape(KH, W * Ci, W * Co)


def fused_double_bn_relu_conv(x2d, s1, b1, bt1, cb1, s2, b2, bt2, cb2,
                              *, H, W, Cin, Cout):
    """x2d: (N, H, W*Cin) f32  ->  (N, H, W*Cout) f32 (both stages fused)."""
    N = x2d.shape[0]
    WCi, WCo = W * Cin, W * Cout

    # Images per grid step: amortize the ~0.35us/step pipeline overhead.
    nb = 1
    for cand in (8, 4, 2, 1):
        if N % cand == 0:
            nb = cand
            break

    def kernel(x_ref, s1_ref, b1_ref, bt1_ref, cb1_ref,
               s2_ref, b2_ref, bt2_ref, cb2_ref,
               o_ref, pad1, pad2):
        # Zero only the halo rows; interior rows are fully overwritten for
        # every image (cheap and safe even when the grid is core-sharded).
        pad1[0:1, :] = jnp.zeros((1, WCi), pad1.dtype)
        pad1[H + 1:H + 2, :] = jnp.zeros((1, WCi), pad1.dtype)
        pad2[0:1, :] = jnp.zeros((1, WCo), pad2.dtype)
        pad2[H + 1:H + 2, :] = jnp.zeros((1, WCo), pad2.dtype)

        for i in range(nb):
            # ---- stage 1: BN1 -> ReLU (f32 VPU) -> Conv3x3 (bf16 MXU) ----
            a1 = jnp.maximum(x_ref[i] * s1_ref[...] + b1_ref[...], 0.0)
            pad1[1:H + 1, :] = a1.astype(pad1.dtype)
            acc1 = jnp.zeros((H, WCo), jnp.float32)
            for ky in range(3):
                acc1 = acc1 + jnp.dot(pad1[ky:ky + H, :], bt1_ref[ky],
                                      preferred_element_type=jnp.float32)
            y1 = acc1 + cb1_ref[...]                    # stage-1 output, stays in VMEM

            # ---- stage 2: BN2 -> ReLU -> Conv3x3, straight from VMEM ----
            a2 = jnp.maximum(y1 * s2_ref[...] + b2_ref[...], 0.0)
            pad2[1:H + 1, :] = a2.astype(pad2.dtype)
            acc2 = jnp.zeros((H, WCo), jnp.float32)
            for ky in range(3):
                acc2 = acc2 + jnp.dot(pad2[ky:ky + H, :], bt2_ref[ky],
                                      preferred_element_type=jnp.float32)
            o_ref[i] = (acc2 + cb2_ref[...]).astype(o_ref.dtype)

    def _nbytes(shape, dtype):
        return int(np.prod(shape)) * jnp.dtype(dtype).itemsize

    block_bytes = (
        _nbytes((nb, H, WCi), jnp.float32)         # input block
        + _nbytes((nb, H, WCo), jnp.float32)       # output block
        + _nbytes((3, WCi, WCo), jnp.bfloat16)     # Toeplitz weights, stage 1
        + _nbytes((3, WCo, WCo), jnp.bfloat16)     # Toeplitz weights, stage 2
        + 2 * _nbytes((1, WCi), jnp.float32)       # BN1 scale/bias (tiled)
        + 4 * _nbytes((1, WCo), jnp.float32)       # BN2 scale/bias, conv biases
        + _nbytes((H + 2, WCi), jnp.bfloat16)      # padded scratch 1
        + _nbytes((H + 2, WCo), jnp.bfloat16)      # padded scratch 2
    )
    # x2 for double buffering, x2 headroom; keep below v7x's 64 MiB per-TC VMEM.
    vmem_limit = int(min(max(4 * block_bytes, 8 * 2 ** 20), 64 * 2 ** 20))

    grid_spec = pltpu.PrefetchScalarGridSpec(
        num_scalar_prefetch=0,
        grid=(N // nb,),
        in_specs=[
            pl.BlockSpec((nb, H, WCi), lambda n: (n, 0, 0)),
            pl.BlockSpec((1, WCi), lambda n: (0, 0)),
            pl.BlockSpec((1, WCi), lambda n: (0, 0)),
            pl.BlockSpec((3, WCi, WCo), lambda n: (0, 0, 0)),
            pl.BlockSpec((1, WCo), lambda n: (0, 0)),
            pl.BlockSpec((1, WCo), lambda n: (0, 0)),
            pl.BlockSpec((1, WCo), lambda n: (0, 0)),
            pl.BlockSpec((3, WCo, WCo), lambda n: (0, 0, 0)),
            pl.BlockSpec((1, WCo), lambda n: (0, 0)),
        ],
        out_specs=pl.BlockSpec((nb, H, WCo), lambda n: (n, 0, 0)),
        scratch_shapes=[
            pltpu.VMEM((H + 2, WCi), jnp.bfloat16),
            pltpu.VMEM((H + 2, WCo), jnp.bfloat16),
        ],
    )

    return pl.pallas_call(
        kernel,
        out_shape=jax.ShapeDtypeStruct((N, H, WCo), jnp.float32),
        grid_spec=grid_spec,
        compiler_params=pltpu.CompilerParams(
            dimension_semantics=("parallel",),
            vmem_limit_bytes=vmem_limit,
        ),
    )(x2d, s1, b1, bt1, cb1, s2, b2, bt2, cb2)


def continus_parallel_conv(x_nchw, params):
    """ContinusParalleConv(pre_Batch_Norm=True) forward. NCHW in / NCHW out."""
    N, Cin, H, W = x_nchw.shape
    Cout = params["w1"].shape[-1]
    WCi, WCo = W * Cin, W * Cout

    # NCHW -> NHWC -> lane-packed (N, H, W*C) slab. In a full UNet the whole
    # pipeline would stay in this layout; the transposes only adapt to the
    # PyTorch NCHW interface at the boundary.
    x = jnp.transpose(x_nchw, (0, 2, 3, 1)).astype(jnp.float32)
    x2d = x.reshape(N, H, WCi)

    s1, b1 = fold_bn(*params["bn1"])
    s2, b2 = fold_bn(*params["bn2"])

    y2d = fused_double_bn_relu_conv(
        x2d,
        jnp.tile(s1, W).reshape(1, WCi).astype(jnp.float32),
        jnp.tile(b1, W).reshape(1, WCi).astype(jnp.float32),
        build_row_toeplitz(params["w1"], W).astype(jnp.bfloat16),
        jnp.tile(params["cb1"], W).reshape(1, WCo).astype(jnp.float32),
        jnp.tile(s2, W).reshape(1, WCo).astype(jnp.float32),
        jnp.tile(b2, W).reshape(1, WCo).astype(jnp.float32),
        build_row_toeplitz(params["w2"], W).astype(jnp.bfloat16),
        jnp.tile(params["cb2"], W).reshape(1, WCo).astype(jnp.float32),
        H=H, W=W, Cin=Cin, Cout=Cout,
    )
    y = y2d.reshape(N, H, W, Cout)
    return jnp.transpose(y, (0, 3, 1, 2))


def reference_forward(x_nchw, params):
    """Plain-JAX (f32) reference for correctness checking."""
    x = jnp.transpose(x_nchw, (0, 2, 3, 1)).astype(jnp.float32)

    def layer(a, scale, bias, w, b):
        a = jnp.maximum(a * scale + bias, 0.0)
        y = jax.lax.conv_general_dilated(
            a, w, window_strides=(1, 1), padding="SAME",
            dimension_numbers=("NHWC", "HWIO", "NHWC"),
            precision=jax.lax.Precision.HIGHEST,
        )
        return y + b

    s1, b1 = fold_bn(*params["bn1"])
    y = layer(x, s1, b1, params["w1"], params["cb1"])
    s2, b2 = fold_bn(*params["bn2"])
    y = layer(y, s2, b2, params["w2"], params["cb2"])
    return jnp.transpose(y, (0, 3, 1, 2))


def init_params(key, in_channels, out_channels):
    ks = jax.random.split(key, 10)
    # BatchNorm params: (gamma, beta, running_mean, running_var), eval-mode stats.
    bn1 = (
        jax.random.uniform(ks[0], (in_channels,), jnp.float32, 0.5, 1.5),
        jax.random.normal(ks[1], (in_channels,), jnp.float32) * 0.1,
        jax.random.normal(ks[2], (in_channels,), jnp.float32) * 0.1,
        jax.random.uniform(ks[3], (in_channels,), jnp.float32, 0.5, 1.5),
    )
    bn2 = (
        jax.random.uniform(ks[4], (out_channels,), jnp.float32, 0.5, 1.5),
        jax.random.normal(ks[5], (out_channels,), jnp.float32) * 0.1,
        jax.random.normal(ks[6], (out_channels,), jnp.float32) * 0.1,
        jax.random.uniform(ks[7], (out_channels,), jnp.float32, 0.5, 1.5),
    )
    # Conv weights: PyTorch layout (Cout, Cin, 3, 3) -> HWIO (3, 3, Cin, Cout).
    w1_oihw = jax.random.normal(ks[8], (out_channels, in_channels, 3, 3), jnp.float32) * 0.1
    w2_oihw = jax.random.normal(ks[9], (out_channels, out_channels, 3, 3), jnp.float32) * 0.1
    return {
        "bn1": bn1,
        "bn2": bn2,
        "w1": jnp.transpose(w1_oihw, (2, 3, 1, 0)),
        "cb1": jnp.zeros((out_channels,), jnp.float32) + 0.05,
        "w2": jnp.transpose(w2_oihw, (2, 3, 1, 0)),
        "cb2": jnp.zeros((out_channels,), jnp.float32) - 0.05,
    }


if __name__ == "__main__":
    key = jax.random.PRNGKey(0)
    k_x, k_p = jax.random.split(key)

    N, Cin, H, W = 2, 4, 16, 16
    Cout = 8
    x = jax.random.normal(k_x, (N, Cin, H, W), jnp.float32)  # NCHW, like PyTorch
    params = init_params(k_p, Cin, Cout)

    out = jax.block_until_ready(continus_parallel_conv(x, params))
    ref = jax.block_until_ready(reference_forward(x, params))

    assert out.shape == (N, Cout, H, W), out.shape
    # bf16 MXU operands with f32 accumulation -> slightly looser tolerance.
    np.testing.assert_allclose(np.asarray(out), np.asarray(ref), rtol=2e-2, atol=2e-2)
    print("KERNEL_OK")
</pallas_src>

<mosaic_0001>
module attributes {stable_mosaic.version = 11 : i64} {
  func.func @kernel(%arg0: i32, %arg1: memref<2x16x64xf32, #tpu.memory_space<vmem>>, %arg2: memref<1x64xf32, #tpu.memory_space<vmem>>, %arg3: memref<1x64xf32, #tpu.memory_space<vmem>>, %arg4: memref<3x64x128xbf16, #tpu.memory_space<vmem>>, %arg5: memref<1x128xf32, #tpu.memory_space<vmem>>, %arg6: memref<1x128xf32, #tpu.memory_space<vmem>>, %arg7: memref<1x128xf32, #tpu.memory_space<vmem>>, %arg8: memref<3x128x128xbf16, #tpu.memory_space<vmem>>, %arg9: memref<1x128xf32, #tpu.memory_space<vmem>>, %arg10: memref<2x16x128xf32, #tpu.memory_space<vmem>>, %arg11: memref<18x64xbf16, #tpu.memory_space<vmem>>, %arg12: memref<18x128xbf16, #tpu.memory_space<vmem>>) attributes {dimension_semantics = [#tpu.dimension_semantics<parallel>], iteration_bounds = array<i64: 1>, scalar_prefetch = 0 : i64, scratch_operands = 2 : i64, tpu.core_type = #tpu.core_type<tc>, window_params = [{transform_indices = @transform_0, window_bounds = array<i64: 2, 16, 64>}, {pipeline_mode = #tpu.pipeline_mode<synchronous>, transform_indices = @transform_1, window_bounds = array<i64: 1, 64>}, {pipeline_mode = #tpu.pipeline_mode<synchronous>, transform_indices = @transform_2, window_bounds = array<i64: 1, 64>}, {pipeline_mode = #tpu.pipeline_mode<synchronous>, transform_indices = @transform_3, window_bounds = array<i64: 3, 64, 128>}, {pipeline_mode = #tpu.pipeline_mode<synchronous>, transform_indices = @transform_4, window_bounds = array<i64: 1, 128>}, {pipeline_mode = #tpu.pipeline_mode<synchronous>, transform_indices = @transform_5, window_bounds = array<i64: 1, 128>}, {pipeline_mode = #tpu.pipeline_mode<synchronous>, transform_indices = @transform_6, window_bounds = array<i64: 1, 128>}, {pipeline_mode = #tpu.pipeline_mode<synchronous>, transform_indices = @transform_7, window_bounds = array<i64: 3, 128, 128>}, {pipeline_mode = #tpu.pipeline_mode<synchronous>, transform_indices = @transform_8, window_bounds = array<i64: 1, 128>}, {transform_indices = @transform_9, window_bounds = array<i64: 2, 16, 128>}]} {
    %cst = arith.constant 0.000000e+00 : bf16
    %0 = vector.broadcast %cst : bf16 to vector<1x64xbf16>
    %c0 = arith.constant 0 : index
    %c0_0 = arith.constant 0 : index
    %1 = vector.load %arg11[%c0, %c0_0] : memref<18x64xbf16, #tpu.memory_space<vmem>>, vector<1x64xbf16>
    tpu.vector_store %arg11[%c0, %c0_0], %0 {strides = array<i32>} : memref<18x64xbf16, #tpu.memory_space<vmem>>, vector<1x64xbf16>,
    %cst_1 = arith.constant 0.000000e+00 : bf16
    %2 = vector.broadcast %cst_1 : bf16 to vector<1x64xbf16>
    %c17 = arith.constant 17 : index
    %c0_2 = arith.constant 0 : index
    %3 = vector.load %arg11[%c17, %c0_2] : memref<18x64xbf16, #tpu.memory_space<vmem>>, vector<1x64xbf16>
    tpu.vector_store %arg11[%c17, %c0_2], %2 {strides = array<i32>} : memref<18x64xbf16, #tpu.memory_space<vmem>>, vector<1x64xbf16>,
    %cst_3 = arith.constant 0.000000e+00 : bf16
    %4 = vector.broadcast %cst_3 : bf16 to vector<1x128xbf16>
    %c0_4 = arith.constant 0 : index
    %c0_5 = arith.constant 0 : index
    %5 = vector.load %arg12[%c0_4, %c0_5] : memref<18x128xbf16, #tpu.memory_space<vmem>>, vector<1x128xbf16>
    tpu.vector_store %arg12[%c0_4, %c0_5], %4 {strides = array<i32>} : memref<18x128xbf16, #tpu.memory_space<vmem>>, vector<1x128xbf16>,
    %cst_6 = arith.constant 0.000000e+00 : bf16
    %6 = vector.broadcast %cst_6 : bf16 to vector<1x128xbf16>
    %c17_7 = arith.constant 17 : index
    %c0_8 = arith.constant 0 : index
    %7 = vector.load %arg12[%c17_7, %c0_8] : memref<18x128xbf16, #tpu.memory_space<vmem>>, vector<1x128xbf16>
    tpu.vector_store %arg12[%c17_7, %c0_8], %6 {strides = array<i32>} : memref<18x128xbf16, #tpu.memory_space<vmem>>, vector<1x128xbf16>,
    %c0_9 = arith.constant 0 : index
    %c0_10 = arith.constant 0 : index
    %c0_11 = arith.constant 0 : index
    %8 = vector.load %arg1[%c0_9, %c0_10, %c0_11] : memref<2x16x64xf32, #tpu.memory_space<vmem>>, vector<1x16x64xf32>
    %9 = vector.shape_cast %8 : vector<1x16x64xf32> to vector<16x64xf32>
    %c0_12 = arith.constant 0 : index
    %c0_13 = arith.constant 0 : index
    %10 = vector.load %arg2[%c0_12, %c0_13] : memref<1x64xf32, #tpu.memory_space<vmem>>, vector<1x64xf32>
    %11 = vector.broadcast %10 : vector<1x64xf32> to vector<16x64xf32>
    %12 = arith.mulf %9, %11 : vector<16x64xf32>
    %c0_14 = arith.constant 0 : index
    %c0_15 = arith.constant 0 : index
    %13 = vector.load %arg3[%c0_14, %c0_15] : memref<1x64xf32, #tpu.memory_space<vmem>>, vector<1x64xf32>
    %14 = vector.broadcast %13 : vector<1x64xf32> to vector<16x64xf32>
    %15 = arith.addf %12, %14 : vector<16x64xf32>
    %cst_16 = arith.constant 0.000000e+00 : f32
    %16 = vector.broadcast %cst_16 : f32 to vector<16x64xf32>
    %17 = arith.maximumf %15, %16 : vector<16x64xf32>
    %18 = arith.truncf %17 : vector<16x64xf32> to vector<16x64xbf16>
    %c1 = arith.constant 1 : index
    %c0_17 = arith.constant 0 : index
    %19 = vector.load %arg11[%c1, %c0_17] : memref<18x64xbf16, #tpu.memory_space<vmem>>, vector<16x64xbf16>
    tpu.vector_store %arg11[%c1, %c0_17], %18 {strides = array<i32>} : memref<18x64xbf16, #tpu.memory_space<vmem>>, vector<16x64xbf16>,
    %cst_18 = arith.constant 0.000000e+00 : f32
    %20 = vector.broadcast %cst_18 : f32 to vector<16x128xf32>
    %c0_19 = arith.constant 0 : index
    %c0_20 = arith.constant 0 : index
    %21 = vector.load %arg11[%c0_19, %c0_20] : memref<18x64xbf16, #tpu.memory_space<vmem>>, vector<16x64xbf16>
    %c0_21 = arith.constant 0 : index
    %c0_22 = arith.constant 0 : index
    %c0_23 = arith.constant 0 : index
    %22 = vector.load %arg4[%c0_21, %c0_22, %c0_23] : memref<3x64x128xbf16, #tpu.memory_space<vmem>>, vector<1x64x128xbf16>
    %23 = vector.shape_cast %22 : vector<1x64x128xbf16> to vector<64x128xbf16>
    %cst_24 = arith.constant dense<0.000000e+00> : vector<16x128xf32>
    %24 = tpu.matmul %21, %23, %cst_24 {dimension_numbers = #tpu.dot_dimension_numbers<[1], [0], [0], [1], [0, 0, 1, 1], [], []>} : vector<16x64xbf16>, vector<64x128xbf16>, vector<16x128xf32> -> vector<16x128xf32>
    %25 = arith.addf %20, %24 : vector<16x128xf32>
    %c1_25 = arith.constant 1 : index
    %c0_26 = arith.constant 0 : index
    %26 = vector.load %arg11[%c1_25, %c0_26] : memref<18x64xbf16, #tpu.memory_space<vmem>>, vector<16x64xbf16>
    %c1_27 = arith.constant 1 : index
    %c0_28 = arith.constant 0 : index
    %c0_29 = arith.constant 0 : index
    %27 = vector.load %arg4[%c1_27, %c0_28, %c0_29] : memref<3x64x128xbf16, #tpu.memory_space<vmem>>, vector<1x64x128xbf16>
    %28 = vector.shape_cast %27 : vector<1x64x128xbf16> to vector<64x128xbf16>
    %cst_30 = arith.constant dense<0.000000e+00> : vector<16x128xf32>
    %29 = tpu.matmul %26, %28, %cst_30 {dimension_numbers = #tpu.dot_dimension_numbers<[1], [0], [0], [1], [0, 0, 1, 1], [], []>} : vector<16x64xbf16>, vector<64x128xbf16>, vector<16x128xf32> -> vector<16x128xf32>
    %30 = arith.addf %25, %29 : vector<16x128xf32>
    %c2 = arith.constant 2 : index
    %c0_31 = arith.constant 0 : index
    %31 = vector.load %arg11[%c2, %c0_31] : memref<18x64xbf16, #tpu.memory_space<vmem>>, vector<16x64xbf16>
    %c2_32 = arith.constant 2 : index
    %c0_33 = arith.constant 0 : index
    %c0_34 = arith.constant 0 : index
    %32 = vector.load %arg4[%c2_32, %c0_33, %c0_34] : memref<3x64x128xbf16, #tpu.memory_space<vmem>>, vector<1x64x128xbf16>
    %33 = vector.shape_cast %32 : vector<1x64x128xbf16> to vector<64x128xbf16>
    %cst_35 = arith.constant dense<0.000000e+00> : vector<16x128xf32>
    %34 = tpu.matmul %31, %33, %cst_35 {dimension_numbers = #tpu.dot_dimension_numbers<[1], [0], [0], [1], [0, 0, 1, 1], [], []>} : vector<16x64xbf16>, vector<64x128xbf16>, vector<16x128xf32> -> vector<16x128xf32>
    %35 = arith.addf %30, %34 : vector<16x128xf32>
    %c0_36 = arith.constant 0 : index
    %c0_37 = arith.constant 0 : index
    %36 = vector.load %arg5[%c0_36, %c0_37] : memref<1x128xf32, #tpu.memory_space<vmem>>, vector<1x128xf32>
    %37 = vector.broadcast %36 : vector<1x128xf32> to vector<16x128xf32>
    %38 = arith.addf %35, %37 : vector<16x128xf32>
    %c0_38 = arith.constant 0 : index
    %c0_39 = arith.constant 0 : index
    %39 = vector.load %arg6[%c0_38, %c0_39] : memref<1x128xf32, #tpu.memory_space<vmem>>, vector<1x128xf32>
    %40 = vector.broadcast %39 : vector<1x128xf32> to vector<16x128xf32>
    %41 = arith.mulf %38, %40 : vector<16x128xf32>
    %c0_40 = arith.constant 0 : index
    %c0_41 = arith.constant 0 : index
    %42 = vector.load %arg7[%c0_40, %c0_41] : memref<1x128xf32, #tpu.memory_space<vmem>>, vector<1x128xf32>
    %43 = vector.broadcast %42 : vector<1x128xf32> to vector<16x128xf32>
    %44 = arith.addf %41, %43 : vector<16x128xf32>
    %cst_42 = arith.constant 0.000000e+00 : f32
    %45 = vector.broadcast %cst_42 : f32 to vector<16x128xf32>
    %46 = arith.maximumf %44, %45 : vector<16x128xf32>
    %47 = arith.truncf %46 : vector<16x128xf32> to vector<16x128xbf16>
    %c1_43 = arith.constant 1 : index
    %c0_44 = arith.constant 0 : index
    %48 = vector.load %arg12[%c1_43, %c0_44] : memref<18x128xbf16, #tpu.memory_space<vmem>>, vector<16x128xbf16>
    tpu.vector_store %arg12[%c1_43, %c0_44], %47 {strides = array<i32>} : memref<18x128xbf16, #tpu.memory_space<vmem>>, vector<16x128xbf16>,
    %cst_45 = arith.constant 0.000000e+00 : f32
    %49 = vector.broadcast %cst_45 : f32 to vector<16x128xf32>
    %c0_46 = arith.constant 0 : index
    %c0_47 = arith.constant 0 : index
    %50 = vector.load %arg12[%c0_46, %c0_47] : memref<18x128xbf16, #tpu.memory_space<vmem>>, vector<16x128xbf16>
    %c0_48 = arith.constant 0 : index
    %c0_49 = arith.constant 0 : index
    %c0_50 = arith.constant 0 : index
    %51 = vector.load %arg8[%c0_48, %c0_49, %c0_50] : memref<3x128x128xbf16, #tpu.memory_space<vmem>>, vector<1x128x128xbf16>
    %52 = vector.shape_cast %51 : vector<1x128x128xbf16> to vector<128x128xbf16>
    %cst_51 = arith.constant dense<0.000000e+00> : vector<16x128xf32>
    %53 = tpu.matmul %50, %52, %cst_51 {dimension_numbers = #tpu.dot_dimension_numbers<[1], [0], [0], [1], [0, 0, 1, 1], [], []>} : vector<16x128xbf16>, vector<128x128xbf16>, vector<16x128xf32> -> vector<16x128xf32>
    %54 = arith.addf %49, %53 : vector<16x128xf32>
    %c1_52 = arith.constant 1 : index
    %c0_53 = arith.constant 0 : index
    %55 = vector.load %arg12[%c1_52, %c0_53] : memref<18x128xbf16, #tpu.memory_space<vmem>>, vector<16x128xbf16>
    %c1_54 = arith.constant 1 : index
    %c0_55 = arith.constant 0 : index
    %c0_56 = arith.constant 0 : index
    %56 = vector.load %arg8[%c1_54, %c0_55, %c0_56] : memref<3x128x128xbf16, #tpu.memory_space<vmem>>, vector<1x128x128xbf16>
    %57 = vector.shape_cast %56 : vector<1x128x128xbf16> to vector<128x128xbf16>
    %cst_57 = arith.constant dense<0.000000e+00> : vector<16x128xf32>
    %58 = tpu.matmul %55, %57, %cst_57 {dimension_numbers = #tpu.dot_dimension_numbers<[1], [0], [0], [1], [0, 0, 1, 1], [], []>} : vector<16x128xbf16>, vector<128x128xbf16>, vector<16x128xf32> -> vector<16x128xf32>
    %59 = arith.addf %54, %58 : vector<16x128xf32>
    %c2_58 = arith.constant 2 : index
    %c0_59 = arith.constant 0 : index
    %60 = vector.load %arg12[%c2_58, %c0_59] : memref<18x128xbf16, #tpu.memory_space<vmem>>, vector<16x128xbf16>
    %c2_60 = arith.constant 2 : index
    %c0_61 = arith.constant 0 : index
    %c0_62 = arith.constant 0 : index
    %61 = vector.load %arg8[%c2_60, %c0_61, %c0_62] : memref<3x128x128xbf16, #tpu.memory_space<vmem>>, vector<1x128x128xbf16>
    %62 = vector.shape_cast %61 : vector<1x128x128xbf16> to vector<128x128xbf16>
    %cst_63 = arith.constant dense<0.000000e+00> : vector<16x128xf32>
    %63 = tpu.matmul %60, %62, %cst_63 {dimension_numbers = #tpu.dot_dimension_numbers<[1], [0], [0], [1], [0, 0, 1, 1], [], []>} : vector<16x128xbf16>, vector<128x128xbf16>, vector<16x128xf32> -> vector<16x128xf32>
    %64 = arith.addf %59, %63 : vector<16x128xf32>
    %c0_64 = arith.constant 0 : index
    %c0_65 = arith.constant 0 : index
    %65 = vector.load %arg9[%c0_64, %c0_65] : memref<1x128xf32, #tpu.memory_space<vmem>>, vector<1x128xf32>
    %66 = vector.broadcast %65 : vector<1x128xf32> to vector<16x128xf32>
    %67 = arith.addf %64, %66 : vector<16x128xf32>
    %c0_66 = arith.constant 0 : index
    %c0_67 = arith.constant 0 : index
    %c0_68 = arith.constant 0 : index
    %68 = vector.load %arg10[%c0_66, %c0_67, %c0_68] : memref<2x16x128xf32, #tpu.memory_space<vmem>>, vector<1x16x128xf32>
    %69 = vector.shape_cast %68 : vector<1x16x128xf32> to vector<16x128xf32>
    %70 = vector.shape_cast %67 : vector<16x128xf32> to vector<1x16x128xf32>
    tpu.vector_store %arg10[%c0_66, %c0_67, %c0_68], %70 {strides = array<i32>} : memref<2x16x128xf32, #tpu.memory_space<vmem>>, vector<1x16x128xf32>,
    %c1_69 = arith.constant 1 : index
    %c0_70 = arith.constant 0 : index
    %c0_71 = arith.constant 0 : index
    %71 = vector.load %arg1[%c1_69, %c0_70, %c0_71] : memref<2x16x64xf32, #tpu.memory_space<vmem>>, vector<1x16x64xf32>
    %72 = vector.shape_cast %71 : vector<1x16x64xf32> to vector<16x64xf32>
    %c0_72 = arith.constant 0 : index
    %c0_73 = arith.constant 0 : index
    %73 = vector.load %arg2[%c0_72, %c0_73] : memref<1x64xf32, #tpu.memory_space<vmem>>, vector<1x64xf32>
    %74 = vector.broadcast %73 : vector<1x64xf32> to vector<16x64xf32>
    %75 = arith.mulf %72, %74 : vector<16x64xf32>
    %c0_74 = arith.constant 0 : index
    %c0_75 = arith.constant 0 : index
    %76 = vector.load %arg3[%c0_74, %c0_75] : memref<1x64xf32, #tpu.memory_space<vmem>>, vector<1x64xf32>
    %77 = vector.broadcast %76 : vector<1x64xf32> to vector<16x64xf32>
    %78 = arith.addf %75, %77 : vector<16x64xf32>
    %cst_76 = arith.constant 0.000000e+00 : f32
    %79 = vector.broadcast %cst_76 : f32 to vector<16x64xf32>
    %80 = arith.maximumf %78, %79 : vector<16x64xf32>
    %81 = arith.truncf %80 : vector<16x64xf32> to vector<16x64xbf16>
    %c1_77 = arith.constant 1 : index
    %c0_78 = arith.constant 0 : index
    %82 = vector.load %arg11[%c1_77, %c0_78] : memref<18x64xbf16, #tpu.memory_space<vmem>>, vector<16x64xbf16>
    tpu.vector_store %arg11[%c1_77, %c0_78], %81 {strides = array<i32>} : memref<18x64xbf16, #tpu.memory_space<vmem>>, vector<16x64xbf16>,
    %cst_79 = arith.constant 0.000000e+00 : f32
    %83 = vector.broadcast %cst_79 : f32 to vector<16x128xf32>
    %c0_80 = arith.constant 0 : index
    %c0_81 = arith.constant 0 : index
    %84 = vector.load %arg11[%c0_80, %c0_81] : memref<18x64xbf16, #tpu.memory_space<vmem>>, vector<16x64xbf16>
    %c0_82 = arith.constant 0 : index
    %c0_83 = arith.constant 0 : index
    %c0_84 = arith.constant 0 : index
    %85 = vector.load %arg4[%c0_82, %c0_83, %c0_84] : memref<3x64x128xbf16, #tpu.memory_space<vmem>>, vector<1x64x128xbf16>
    %86 = vector.shape_cast %85 : vector<1x64x128xbf16> to vector<64x128xbf16>
    %cst_85 = arith.constant dense<0.000000e+00> : vector<16x128xf32>
    %87 = tpu.matmul %84, %86, %cst_85 {dimension_numbers = #tpu.dot_dimension_numbers<[1], [0], [0], [1], [0, 0, 1, 1], [], []>} : vector<16x64xbf16>, vector<64x128xbf16>, vector<16x128xf32> -> vector<16x128xf32>
    %88 = arith.addf %83, %87 : vector<16x128xf32>
    %c1_86 = arith.constant 1 : index
    %c0_87 = arith.constant 0 : index
    %89 = vector.load %arg11[%c1_86, %c0_87] : memref<18x64xbf16, #tpu.memory_space<vmem>>, vector<16x64xbf16>
    %c1_88 = arith.constant 1 : index
    %c0_89 = arith.constant 0 : index
    %c0_90 = arith.constant 0 : index
    %90 = vector.load %arg4[%c1_88, %c0_89, %c0_90] : memref<3x64x128xbf16, #tpu.memory_space<vmem>>, vector<1x64x128xbf16>
    %91 = vector.shape_cast %90 : vector<1x64x128xbf16> to vector<64x128xbf16>
    %cst_91 = arith.constant dense<0.000000e+00> : vector<16x128xf32>
    %92 = tpu.matmul %89, %91, %cst_91 {dimension_numbers = #tpu.dot_dimension_numbers<[1], [0], [0], [1], [0, 0, 1, 1], [], []>} : vector<16x64xbf16>, vector<64x128xbf16>, vector<16x128xf32> -> vector<16x128xf32>
    %93 = arith.addf %88, %92 : vector<16x128xf32>
    %c2_92 = arith.constant 2 : index
    %c0_93 = arith.constant 0 : index
    %94 = vector.load %arg11[%c2_92, %c0_93] : memref<18x64xbf16, #tpu.memory_space<vmem>>, vector<16x64xbf16>
    %c2_94 = arith.constant 2 : index
    %c0_95 = arith.constant 0 : index
    %c0_96 = arith.constant 0 : index
    %95 = vector.load %arg4[%c2_94, %c0_95, %c0_96] : memref<3x64x128xbf16, #tpu.memory_space<vmem>>, vector<1x64x128xbf16>
    %96 = vector.shape_cast %95 : vector<1x64x128xbf16> to vector<64x128xbf16>
    %cst_97 = arith.constant dense<0.000000e+00> : vector<16x128xf32>
    %97 = tpu.matmul %94, %96, %cst_97 {dimension_numbers = #tpu.dot_dimension_numbers<[1], [0], [0], [1], [0, 0, 1, 1], [], []>} : vector<16x64xbf16>, vector<64x128xbf16>, vector<16x128xf32> -> vector<16x128xf32>
    %98 = arith.addf %93, %97 : vector<16x128xf32>
    %c0_98 = arith.constant 0 : index
    %c0_99 = arith.constant 0 : index
    %99 = vector.load %arg5[%c0_98, %c0_99] : memref<1x128xf32, #tpu.memory_space<vmem>>, vector<1x128xf32>
    %100 = vector.broadcast %99 : vector<1x128xf32> to vector<16x128xf32>
    %101 = arith.addf %98, %100 : vector<16x128xf32>
    %c0_100 = arith.constant 0 : index
    %c0_101 = arith.constant 0 : index
    %102 = vector.load %arg6[%c0_100, %c0_101] : memref<1x128xf32, #tpu.memory_space<vmem>>, vector<1x128xf32>
    %103 = vector.broadcast %102 : vector<1x128xf32> to vector<16x128xf32>
    %104 = arith.mulf %101, %103 : vector<16x128xf32>
    %c0_102 = arith.constant 0 : index
    %c0_103 = arith.constant 0 : index
    %105 = vector.load %arg7[%c0_102, %c0_103] : memref<1x128xf32, #tpu.memory_space<vmem>>, vector<1x128xf32>
    %106 = vector.broadcast %105 : vector<1x128xf32> to vector<16x128xf32>
    %107 = arith.addf %104, %106 : vector<16x128xf32>
    %cst_104 = arith.constant 0.000000e+00 : f32
    %108 = vector.broadcast %cst_104 : f32 to vector<16x128xf32>
    %109 = arith.maximumf %107, %108 : vector<16x128xf32>
    %110 = arith.truncf %109 : vector<16x128xf32> to vector<16x128xbf16>
    %c1_105 = arith.constant 1 : index
    %c0_106 = arith.constant 0 : index
    %111 = vector.load %arg12[%c1_105, %c0_106] : memref<18x128xbf16, #tpu.memory_space<vmem>>, vector<16x128xbf16>
    tpu.vector_store %arg12[%c1_105, %c0_106], %110 {strides = array<i32>} : memref<18x128xbf16, #tpu.memory_space<vmem>>, vector<16x128xbf16>,
    %cst_107 = arith.constant 0.000000e+00 : f32
    %112 = vector.broadcast %cst_107 : f32 to vector<16x128xf32>
    %c0_108 = arith.constant 0 : index
    %c0_109 = arith.constant 0 : index
    %113 = vector.load %arg12[%c0_108, %c0_109] : memref<18x128xbf16, #tpu.memory_space<vmem>>, vector<16x128xbf16>
    %c0_110 = arith.constant 0 : index
    %c0_111 = arith.constant 0 : index
    %c0_112 = arith.constant 0 : index
    %114 = vector.load %arg8[%c0_110, %c0_111, %c0_112] : memref<3x128x128xbf16, #tpu.memory_space<vmem>>, vector<1x128x128xbf16>
    %115 = vector.shape_cast %114 : vector<1x128x128xbf16> to vector<128x128xbf16>
    %cst_113 = arith.constant dense<0.000000e+00> : vector<16x128xf32>
    %116 = tpu.matmul %113, %115, %cst_113 {dimension_numbers = #tpu.dot_dimension_numbers<[1], [0], [0], [1], [0, 0, 1, 1], [], []>} : vector<16x128xbf16>, vector<128x128xbf16>, vector<16x128xf32> -> vector<16x128xf32>
    %117 = arith.addf %112, %116 : vector<16x128xf32>
    %c1_114 = arith.constant 1 : index
    %c0_115 = arith.constant 0 : index
    %118 = vector.load %arg12[%c1_114, %c0_115] : memref<18x128xbf16, #tpu.memory_space<vmem>>, vector<16x128xbf16>
    %c1_116 = arith.constant 1 : index
    %c0_117 = arith.constant 0 : index
    %c0_118 = arith.constant 0 : index
    %119 = vector.load %arg8[%c1_116, %c0_117, %c0_118] : memref<3x128x128xbf16, #tpu.memory_space<vmem>>, vector<1x128x128xbf16>
    %120 = vector.shape_cast %119 : vector<1x128x128xbf16> to vector<128x128xbf16>
    %cst_119 = arith.constant dense<0.000000e+00> : vector<16x128xf32>
    %121 = tpu.matmul %118, %120, %cst_119 {dimension_numbers = #tpu.dot_dimension_numbers<[1], [0], [0], [1], [0, 0, 1, 1], [], []>} : vector<16x128xbf16>, vector<128x128xbf16>, vector<16x128xf32> -> vector<16x128xf32>
    %122 = arith.addf %117, %121 : vector<16x128xf32>
    %c2_120 = arith.constant 2 : index
    %c0_121 = arith.constant 0 : index
    %123 = vector.load %arg12[%c2_120, %c0_121] : memref<18x128xbf16, #tpu.memory_space<vmem>>, vector<16x128xbf16>
    %c2_122 = arith.constant 2 : index
    %c0_123 = arith.constant 0 : index
    %c0_124 = arith.constant 0 : index
    %124 = vector.load %arg8[%c2_122, %c0_123, %c0_124] : memref<3x128x128xbf16, #tpu.memory_space<vmem>>, vector<1x128x128xbf16>
    %125 = vector.shape_cast %124 : vector<1x128x128xbf16> to vector<128x128xbf16>
    %cst_125 = arith.constant dense<0.000000e+00> : vector<16x128xf32>
    %126 = tpu.matmul %123, %125, %cst_125 {dimension_numbers = #tpu.dot_dimension_numbers<[1], [0], [0], [1], [0, 0, 1, 1], [], []>} : vector<16x128xbf16>, vector<128x128xbf16>, vector<16x128xf32> -> vector<16x128xf32>
    %127 = arith.addf %122, %126 : vector<16x128xf32>
    %c0_126 = arith.constant 0 : index
    %c0_127 = arith.constant 0 : index
    %128 = vector.load %arg9[%c0_126, %c0_127] : memref<1x128xf32, #tpu.memory_space<vmem>>, vector<1x128xf32>
    %129 = vector.broadcast %128 : vector<1x128xf32> to vector<16x128xf32>
    %130 = arith.addf %127, %129 : vector<16x128xf32>
    %c1_128 = arith.constant 1 : index
    %c0_129 = arith.constant 0 : index
    %c0_130 = arith.constant 0 : index
    %131 = vector.load %arg10[%c1_128, %c0_129, %c0_130] : memref<2x16x128xf32, #tpu.memory_space<vmem>>, vector<1x16x128xf32>
    %132 = vector.shape_cast %131 : vector<1x16x128xf32> to vector<16x128xf32>
    %133 = vector.shape_cast %130 : vector<16x128xf32> to vector<1x16x128xf32>
    tpu.vector_store %arg10[%c1_128, %c0_129, %c0_130], %133 {strides = array<i32>} : memref<2x16x128xf32, #tpu.memory_space<vmem>>, vector<1x16x128xf32>,
    return
  }
  func.func @transform_0(%arg0: i32) -> (i32, i32, i32) {
    %c0_i32 = arith.constant 0 : i32
    %c0_i32_0 = arith.constant 0 : i32
    %c0_i32_1 = arith.constant 0 : i32
    return %arg0, %c0_i32, %c0_i32_0 : i32, i32, i32
  }
  func.func @transform_1(%arg0: i32) -> (i32, i32) {
    %c0_i32 = arith.constant 0 : i32
    %c0_i32_0 = arith.constant 0 : i32
    %c0_i32_1 = arith.constant 0 : i32
    return %c0_i32, %c0_i32_0 : i32, i32
  }
  func.func @transform_2(%arg0: i32) -> (i32, i32) {
    %c0_i32 = arith.constant 0 : i32
    %c0_i32_0 = arith.constant 0 : i32
    %c0_i32_1 = arith.constant 0 : i32
    return %c0_i32, %c0_i32_0 : i32, i32
  }
  func.func @transform_3(%arg0: i32) -> (i32, i32, i32) {
    %c0_i32 = arith.constant 0 : i32
    %c0_i32_0 = arith.constant 0 : i32
    %c0_i32_1 = arith.constant 0 : i32
    %c0_i32_2 = arith.constant 0 : i32
    return %c0_i32, %c0_i32_0, %c0_i32_1 : i32, i32, i32
  }
  func.func @transform_4(%arg0: i32) -> (i32, i32) {
    %c0_i32 = arith.constant 0 : i32
    %c0_i32_0 = arith.constant 0 : i32
    %c0_i32_1 = arith.constant 0 : i32
    return %c0_i32, %c0_i32_0 : i32, i32
  }
  func.func @transform_5(%arg0: i32) -> (i32, i32) {
    %c0_i32 = arith.constant 0 : i32
    %c0_i32_0 = arith.constant 0 : i32
    %c0_i32_1 = arith.constant 0 : i32
    return %c0_i32, %c0_i32_0 : i32, i32
  }
  func.func @transform_6(%arg0: i32) -> (i32, i32) {
    %c0_i32 = arith.constant 0 : i32
    %c0_i32_0 = arith.constant 0 : i32
    %c0_i32_1 = arith.constant 0 : i32
    return %c0_i32, %c0_i32_0 : i32, i32
  }
  func.func @transform_7(%arg0: i32) -> (i32, i32, i32) {
    %c0_i32 = arith.constant 0 : i32
    %c0_i32_0 = arith.constant 0 : i32
    %c0_i32_1 = arith.constant 0 : i32
    %c0_i32_2 = arith.constant 0 : i32
    return %c0_i32, %c0_i32_0, %c0_i32_1 : i32, i32, i32
  }
  func.func @transform_8(%arg0: i32) -> (i32, i32) {
    %c0_i32 = arith.constant 0 : i32
    %c0_i32_0 = arith.constant 0 : i32
    %c0_i32_1 = arith.constant 0 : i32
    return %c0_i32, %c0_i32_0 : i32, i32
  }
  func.func @transform_9(%arg0: i32) -> (i32, i32, i32) {
    %c0_i32 = arith.constant 0 : i32
    %c0_i32_0 = arith.constant 0 : i32
    %c0_i32_1 = arith.constant 0 : i32
    return %arg0, %c0_i32, %c0_i32_0 : i32, i32, i32
  }
}

</mosaic_0001>

<llo_original>
// kernel: tpu_custom_call.1
$region0: #{tpu_custom_call.1}
  #allocation0 [shape = 'u32[]', space=smem, size = 0x4, offset = 0x4, fixed_abs, tag = 'smem constant byte address 0x4 - core index']
  #allocation1 [shape = 'u32[72,128]{1,0:T(1,128)}', space=vmem, size = 0x9000, scoped, tag = 'internal scratch']
  #allocation2 [shape = 'bf16[18,64]{1,0:T(8,128)(2,1)}', space=vmem, size = 0x1800, scoped, tag = 'scratch operand']
  #allocation3 [shape = 'bf16[18,128]{1,0:T(8,128)(2,1)}', space=vmem, size = 0x1800, scoped, tag = 'scratch operand']
  %s0 = inlined_call_operand.hbm [shape: f32[2,16,64], index: 0, kind: input, shape index: {}]
  %s1 = inlined_call_operand.hbm [shape: f32[1,64], index: 1, kind: input, shape index: {}]
  %s2 = inlined_call_operand.vmem [shape: f32[1,64], index: 2, kind: input, shape index: {}]
  %s3 = inlined_call_operand.hbm [shape: bf16[3,64,128], index: 3, kind: input, shape index: {}]
  %s4 = inlined_call_operand.vmem [shape: f32[1,128], index: 4, kind: input, shape index: {}]
  %s5 = inlined_call_operand.vmem [shape: f32[1,128], index: 5, kind: input, shape index: {}]
  %s6 = inlined_call_operand.vmem [shape: f32[1,128], index: 6, kind: input, shape index: {}]
  %s7 = inlined_call_operand.hbm [shape: bf16[3,128,128], index: 7, kind: input, shape index: {}]
  %s8 = inlined_call_operand.vmem [shape: f32[1,128], index: 8, kind: input, shape index: {}]
  %s9 = inlined_call_operand.hbm [shape: f32[2,16,128], index: 9, kind: output, shape index: {}]
  %s10 = sld [smem:[#allocation0]]
  $region62: #{tpu_custom_call.1} parent=0
    _
  %s12 = ssub.s32 1, %s10
  %s13 = scalar_select 0, %s12, %s10
  $region1: #{tpu_custom_call.1} parent=0
    #allocation4 [shape = 'u8[16384]{0}', space=vmem, size = 0x4000, scoped, tag = 'input window, operand 0, single buffered']
    #allocation5 [shape = 's32[1]{0}', space=sflag, size = 0x4, scoped, tag = 'scoped memory for tpu_custom_call.1']
    #allocation6 [shape = 's32[1]{0}', space=sflag, size = 0x4, scoped, tag = 'scoped memory for tpu_custom_call.1']
    #allocation7 [shape = 'u8[512]{0}', space=vmem, size = 0x400, scoped, tag = 'input window, operand 1, single buffered']
    #allocation8 [shape = 's32[1]{0}', space=sflag, size = 0x4, scoped, tag = 'scoped memory for tpu_custom_call.1']
    #allocation9 [shape = 'u8[49152]{0}', space=vmem, size = 0xc000, scoped, tag = 'input window, operand 3, single buffered']
    #allocation10 [shape = 'u8[98304]{0}', space=vmem, size = 0x18000, scoped, tag = 'input window, operand 7, single buffered']
    #allocation11 [shape = 's32[1]{0}', space=sflag, size = 0x4, scoped, tag = 'scoped memory for tpu_custom_call.1']
    #allocation12 [shape = 'u8[16384]{0}', space=vmem, size = 0x4000, scoped, tag = 'output window, operand 0, single buffered']
    %14 = vsyncpa [#allocation5], 0
    %15 = vsyncpa [#allocation8], 0
    %16 = vsyncpa [#allocation11], 0
    %17 = vsyncpa [#allocation6], 0
    // Predicated region
    $region2: #{tpu_custom_call.1} parent=1 // pred_check
      _
    $region3: #{tpu_custom_call.1} parent=1 // pred_check_branch
      %19 = sbr.rel (0) target = $region5
    $region4: #{tpu_custom_call.1} parent=1 // pred_region
      %21 = vsyncadd [#allocation5], 0
      %s22 = sshll.u32 %s0, 4
      %s23 = int_to_ptr.hbm [resolvable:$true] %s22
      %s24 = sshll.u32 [#allocation4], 4
      %s25 = int_to_ptr.vmem [resolvable:$true] %s24
      %30 = dma.hbm_to_vmem [thread:$0]  %s23, 512, %s25, [#allocation5], 128, 128, 8
    $region5: #{tpu_custom_call.1} parent=1 // pred_fallthru
      _
    // Predicated region
    $region6: #{tpu_custom_call.1} parent=1 // pred_check
      _
    $region7: #{tpu_custom_call.1} parent=1 // pred_check_branch
      %32 = sbr.rel (0) target = $region9
    $region8: #{tpu_custom_call.1} parent=1 // pred_region
      %34 = vsyncadd [#allocation8], 0
      %s36 = sshll.u32 %s1, 4
      %s37 = int_to_ptr.hbm [resolvable:$true] %s36
      %s38 = sshll.u32 [#allocation7], 4
      %s39 = int_to_ptr.vmem [resolvable:$true] %s38
      %41 = dma.hbm_to_vmem [thread:$0]  %s37, 16, %s39, [#allocation8]
    $region9: #{tpu_custom_call.1} parent=1 // pred_fallthru
      _
    // Predicated region
    $region10: #{tpu_custom_call.1} parent=1 // pred_check
      _
    $region11: #{tpu_custom_call.1} parent=1 // pred_check_branch
      %43 = sbr.rel (0) target = $region13
    $region12: #{tpu_custom_call.1} parent=1 // pred_region
      _
    $region13: #{tpu_custom_call.1} parent=1 // pred_fallthru
      _
    // Predicated region
    $region14: #{tpu_custom_call.1} parent=1 // pred_check
      _
    $region15: #{tpu_custom_call.1} parent=1 // pred_check_branch
      %45 = sbr.rel (0) target = $region17
    $region16: #{tpu_custom_call.1} parent=1 // pred_region
      %47 = vsyncadd [#allocation8], 0
      %s48 = sshll.u32 %s3, 4
      %s49 = int_to_ptr.hbm [resolvable:$true] %s48
      %s50 = sshll.u32 [#allocation9], 4
      %s51 = int_to_ptr.vmem [resolvable:$true] %s50
      %56 = dma.hbm_to_vmem [thread:$0]  %s49, 1536, %s51, [#allocation8], 64, 64, 4
    $region17: #{tpu_custom_call.1} parent=1 // pred_fallthru
      _
    // Predicated region
    $region18: #{tpu_custom_call.1} parent=1 // pred_check
      _
    $region19: #{tpu_custom_call.1} parent=1 // pred_check_branch
      %58 = sbr.rel (0) target = $region21
    $region20: #{tpu_custom_call.1} parent=1 // pred_region
      _
    $region21: #{tpu_custom_call.1} parent=1 // pred_fallthru
      _
    // Predicated region
    $region22: #{tpu_custom_call.1} parent=1 // pred_check
      _
    $region23: #{tpu_custom_call.1} parent=1 // pred_check_branch
      %60 = sbr.rel (0) target = $region25
    $region24: #{tpu_custom_call.1} parent=1 // pred_region
      _
    $region25: #{tpu_custom_call.1} parent=1 // pred_fallthru
      _
    // Predicated region
    $region26: #{tpu_custom_call.1} parent=1 // pred_check
      _
    $region27: #{tpu_custom_call.1} parent=1 // pred_check_branch
      %62 = sbr.rel (0) target = $region29
    $region28: #{tpu_custom_call.1} parent=1 // pred_region
      _
    $region29: #{tpu_custom_call.1} parent=1 // pred_fallthru
      _
    // Predicated region
    $region30: #{tpu_custom_call.1} parent=1 // pred_check
      _
    $region31: #{tpu_custom_call.1} parent=1 // pred_check_branch
      %64 = sbr.rel (0) target = $region33
    $region32: #{tpu_custom_call.1} parent=1 // pred_region
      %66 = vsyncadd [#allocation11], 0
      %s67 = sshll.u32 %s7, 4
      %s68 = int_to_ptr.hbm [resolvable:$true] %s67
      %s69 = sshll.u32 [#allocation10], 4
      %s70 = int_to_ptr.vmem [resolvable:$true] %s69
      %75 = dma.hbm_to_vmem [thread:$0]  %s68, 3072, %s70, [#allocation11], 64, 64, 4
    $region33: #{tpu_custom_call.1} parent=1 // pred_fallthru
      _
    // Predicated region
    $region34: #{tpu_custom_call.1} parent=1 // pred_check
      _
    $region35: #{tpu_custom_call.1} parent=1 // pred_check_branch
      %77 = sbr.rel (0) target = $region37
    $region36: #{tpu_custom_call.1} parent=1 // pred_region
      _
    $region37: #{tpu_custom_call.1} parent=1 // pred_fallthru
      _
    // Predicated region
    $region38: #{tpu_custom_call.1} parent=1 // pred_check
      _
    $region39: #{tpu_custom_call.1} parent=1 // pred_check_branch
      %79 = sbr.rel (0) target = $region41
    $region40: #{tpu_custom_call.1} parent=1 // pred_region
      %81 = dma.done [#allocation5], 512
    $region41: #{tpu_custom_call.1} parent=1 // pred_fallthru
      _
    // Predicated region
    $region42: #{tpu_custom_call.1} parent=1 // pred_check
      _
    $region43: #{tpu_custom_call.1} parent=1 // pred_check_branch
      %83 = sbr.rel (0) target = $region45
    $region44: #{tpu_custom_call.1} parent=1 // pred_region
      %85 = dma.done [#allocation8], 16
    $region45: #{tpu_custom_call.1} parent=1 // pred_fallthru
      _
    // Predicated region
    $region46: #{tpu_custom_call.1} parent=1 // pred_check
      _
    $region47: #{tpu_custom_call.1} parent=1 // pred_check_branch
      %87 = sbr.rel (0) target = $region49
    $region48: #{tpu_custom_call.1} parent=1 // pred_region
      %89 = dma.done [#allocation8], 1536
    $region49: #{tpu_custom_call.1} parent=1 // pred_fallthru
      _
    // Predicated region
    $region50: #{tpu_custom_call.1} parent=1 // pred_check
      _
    $region51: #{tpu_custom_call.1} parent=1 // pred_check_branch
      %91 = sbr.rel (0) target = $region53
    $region52: #{tpu_custom_call.1} parent=1 // pred_region
      %93 = dma.done [#allocation11], 3072
    $region53: #{tpu_custom_call.1} parent=1 // pred_fallthru
      _
    %vm95 = vcmask 516096
    %vm96 = vsmask.f32 256
    %vm97 = vmand %vm95, %vm96
    %v98 = vld [vmem:[#allocation2] sm:$0x1]
    %v99 = vsel %vm97, 0, %v98
    %100 = vst [vmem:[#allocation2] sm:$0x1] %v99
    %vm101 = vsmask.f32 7938
    %vm102 = vmand %vm95, %vm101
    %v103 = vld [vmem:[#allocation2 + $0x8] sm:$0x1]
    %v104 = vsel %vm102, 0, %v103
    %105 = vst [vmem:[#allocation2 + $0x8] sm:$0x1] %v104
    %vm106 = vcmask 1040384
    %vm107 = vmand %vm106, %vm96
    %v108 = vld [vmem:[#allocation3] sm:$0x1]
    %v109 = vsel %vm107, 0, %v108
    %110 = vst [vmem:[#allocation3] sm:$0x1] %v109
    %vm111 = vmand %vm106, %vm101
    %v112 = vld [vmem:[#allocation3 + $0x8] sm:$0x1]
    %v113 = vsel %vm111, 0, %v112
    %114 = vst [vmem:[#allocation3 + $0x8] sm:$0x1] %v113
    %v115 = vld [vmem:[#allocation4] sm:$0xff]
    %v116 = vld [vmem:[#allocation4 + $0x8] sm:$0xff]
    %v117 = vld [vmem:[#allocation7] sm:$0x1]
    %v119 = vperm.slane %v117, 0
    %v121 = vmul.f32 %v115, %v119
    %v122 = vmul.f32 %v116, %v119
    %v123 = vld [vmem:[%s2] sm:$0x1]
    %v125 = vperm.slane %v123, 0
    %v127 = vadd.f32 %v121, %v125
    %v128 = vadd.f32 %v122, %v125
    %v129 = vmax.f32 %v127, 0.0
    %v130 = vmax.f32 %v128, 0.0
    %v131 = vpack.c.bf16 %v129, %v129
    %v132 = vpack.c.bf16 %v130, %v130
    %vm133 = vsmask.f32 4368
    %vm134 = vmor %vm96, %vm133
    %v136 = vshrl.u32 %v131, 16
    %v138 = vrot.slane %v136, 7
    %v139 = vshll.u32 %v131, 16
    %v141 = vor.u32 %v138, %v139
    %v142 = vrot.slane %v138, 4
    %v144 = vshrl.u32 %v132, 16
    %v146 = vrot.slane %v144, 7
    %v147 = vshll.u32 %v132, 16
    %v149 = vor.u32 %v146, %v147
    %v150 = vsel %vm134, %v142, %v149
    %v151 = vrot.slane %v146, 4
    %vm155 = vcmask 519168
    %vm156 = vmand %vm155, %vm101
    %v157 = vld [vmem:[#allocation2] sm:$0xf]
    %v158 = vsel %vm156, %v141, %v157
    %159 = vst [vmem:[#allocation2] sm:$0xf] %v158
    %vm160 = vcmask 519168
    %161 = vst.msk [vmem:[#allocation2 + $0x4] sm:$0xf] %vm160, %v150
    %v162 = vld [vmem:[#allocation2 + $0x8] sm:$0x1]
    %v163 = vsel %vm97, %v151, %v162
    %164 = vst [vmem:[#allocation2 + $0x8] sm:$0x1] %v163
    %v165 = vld [vmem:[#allocation2] sm:$0xf]
    %v166 = vld [vmem:[#allocation2 + $0x4] sm:$0xf]
    %v167 = vld [vmem:[#allocation9] sm:$0xf]
    %v168 = vld [vmem:[#allocation9 + $0x4] sm:$0xf]
    %v169 = vld [vmem:[#allocation9 + $0x8] sm:$0xf]
    %v170 = vld [vmem:[#allocation9 + $0xc] sm:$0xf]
    %v171 = vld [vmem:[#allocation9 + $0x10] sm:$0xf]
    %v172 = vld [vmem:[#allocation9 + $0x14] sm:$0xf]
    %v173 = vld [vmem:[#allocation9 + $0x18] sm:$0xf]
    %v174 = vld [vmem:[#allocation9 + $0x1c] sm:$0xf]
    %v175 = vld [vmem:[#allocation2 + $0x8] sm:$0x1]
    %s176 = scalar_lea.vmem [#allocation9], 32
    %v177 = vld [vmem:[%s176] sm:$0xf]
    %v178 = vld [vmem:[%s176 + $0x4] sm:$0xf]
    %v179 = vld [vmem:[%s176 + $0x8] sm:$0xf]
    %v180 = vld [vmem:[%s176 + $0xc] sm:$0xf]
    %v181 = vld [vmem:[%s176 + $0x10] sm:$0xf]
    %v182 = vld [vmem:[%s176 + $0x14] sm:$0xf]
    %v183 = vld [vmem:[%s176 + $0x18] sm:$0xf]
    %v184 = vld [vmem:[%s176 + $0x1c] sm:$0xf]
    %v188 = vunpack.c.l.b16 %v165
    %v189 = vunpack.c.l.b16 %v166
    %v190 = vunpack.c.l.b16 %v175
    %v191 = vpack.c.b16 %v189, %v188
    %v192 = vpack.c.b16 %v190, %v190
    %vm193 = vsmask.f32 7424
    %v195 = vshrl.u32 %v191, 16
    %v197 = vshll.u32 %v191, 16
    %v199 = vrot.slane %v197, 1
    %v200 = vor.u32 %v195, %v199
    %v202 = vshll.u32 %v192, 16
    %v204 = vrot.slane %v202, 1
    %v205 = vsel %vm193, %v200, %v204
    %v214 = vunpack.c.l.b16 %v177
    %v215 = vunpack.c.l.b16 %v178
    %v216 = vunpack.c.l.b16 %v179
    %v217 = vunpack.c.l.b16 %v180
    %v218 = vunpack.c.l.b16 %v181
    %v219 = vunpack.c.l.b16 %v182
    %v220 = vunpack.c.l.b16 %v183
    %v221 = vunpack.c.l.b16 %v184
    %v222 = vpack.c.b16 %v215, %v214
    %v223 = vpack.c.b16 %v217, %v216
    %v224 = vpack.c.b16 %v219, %v218
    %v225 = vpack.c.b16 %v221, %v220
    %vm230 = vcmask 523264
    %v232 = vsel %vm230, %v205, 0
    %234 = vmatpush.bf16.msra.mxu0 0
    %235 = vmatpush.bf16.msra.mxu0 0
    %236 = vmatpush.bf16.msra.mxu0 0
    %237 = vmatpush.bf16.msra.mxu0 0
    %238 = vmatpush.bf16.msra.mxu0 %v225
    %239 = vmatpush.bf16.msra.mxu0 %v224
    %240 = vmatpush.bf16.msra.mxu0 %v223
    %241 = vmatpush.bf16.msra.mxu0 %v222
    %242 = vmatmul.bf16.gmra.mxu0 %v232
    %v243 = vpop.f32.mrf.mxu0
    %v244 = vadd.f32 0.0, %v243
    %v245 = vpop.f32.mrf.mxu0
    %v246 = vadd.f32 0.0, %v245
    %247 = vdwg.mxu0
    %v256 = vunpack.c.l.b16 %v167
    %v257 = vunpack.c.l.b16 %v168
    %v258 = vunpack.c.l.b16 %v169
    %v259 = vunpack.c.l.b16 %v170
    %v260 = vunpack.c.l.b16 %v171
    %v261 = vunpack.c.l.b16 %v172
    %v262 = vunpack.c.l.b16 %v173
    %v263 = vunpack.c.l.b16 %v174
    %v264 = vpack.c.b16 %v257, %v256
    %v265 = vpack.c.b16 %v259, %v258
    %v266 = vpack.c.b16 %v261, %v260
    %v267 = vpack.c.b16 %v263, %v262
    %v272 = vsel %vm230, %v191, 0
    %274 = vmatpush.bf16.msra.mxu0 0
    %275 = vmatpush.bf16.msra.mxu0 0
    %276 = vmatpush.bf16.msra.mxu0 0
    %277 = vmatpush.bf16.msra.mxu0 0
    %278 = vmatpush.bf16.msra.mxu0 %v267
    %279 = vmatpush.bf16.msra.mxu0 %v266
    %280 = vmatpush.bf16.msra.mxu0 %v265
    %281 = vmatpush.bf16.msra.mxu0 %v264
    %282 = vmatmul.bf16.gmra.mxu0 %v272
    %v283 = vpop.f32.mrf.mxu0
    %v284 = vadd.f32 %v244, %v283
    %v285 = vpop.f32.mrf.mxu0
    %v286 = vadd.f32 %v246, %v285
    %287 = vdwg.mxu0
    %v288 = vld [vmem:[#allocation2] sm:$0xe]
    %s289 = scalar_lea.vmem [#allocation9], 64
    %v290 = vld [vmem:[%s289] sm:$0xf]
    %v291 = vld [vmem:[%s289 + $0x4] sm:$0xf]
    %v292 = vld [vmem:[%s289 + $0x8] sm:$0xf]
    %v293 = vld [vmem:[%s289 + $0xc] sm:$0xf]
    %v294 = vld [vmem:[%s289 + $0x10] sm:$0xf]
    %v295 = vld [vmem:[%s289 + $0x14] sm:$0xf]
    %v296 = vld [vmem:[%s289 + $0x18] sm:$0xf]
    %v297 = vld [vmem:[%s289 + $0x1c] sm:$0xf]
    %v299 = vunpack.c.l.b16 %v288
    %v300 = vpack.c.b16 %v189, %v299
    %vm301 = vcmask 1046528
    %v302 = vrot.slane %v300, 1
    %v303 = vrot.slane %v192, 1
    %v304 = vsel %vm301, %v302, %v303
    %v313 = vunpack.c.l.b16 %v290
    %v314 = vunpack.c.l.b16 %v291
    %v315 = vunpack.c.l.b16 %v292
    %v316 = vunpack.c.l.b16 %v293
    %v317 = vunpack.c.l.b16 %v294
    %v318 = vunpack.c.l.b16 %v295
    %v319 = vunpack.c.l.b16 %v296
    %v320 = vunpack.c.l.b16 %v297
    %v321 = vpack.c.b16 %v314, %v313
    %v322 = vpack.c.b16 %v316, %v315
    %v323 = vpack.c.b16 %v318, %v317
    %v324 = vpack.c.b16 %v320, %v319
    %v330 = vsel %vm230, %v304, 0
    %332 = vmatpush.bf16.msra.mxu0 0
    %333 = vmatpush.bf16.msra.mxu0 0
    %334 = vmatpush.bf16.msra.mxu0 0
    %335 = vmatpush.bf16.msra.mxu0 0
    %336 = vmatpush.bf16.msra.mxu0 %v324
    %337 = vmatpush.bf16.msra.mxu0 %v323
    %338 = vmatpush.bf16.msra.mxu0 %v322
    %339 = vmatpush.bf16.msra.mxu0 %v321
    %340 = vmatmul.bf16.gmra.mxu0 %v330
    %v341 = vpop.f32.mrf.mxu0
    %v342 = vadd.f32 0.0, %v341
    %v343 = vpop.f32.mrf.mxu0
    %v344 = vadd.f32 0.0, %v343
    %345 = vdwg.mxu0
    %v346 = vadd.f32 %v284, %v342
    %v347 = vadd.f32 %v286, %v344
    %v348 = vld [vmem:[%s4] sm:$0x1]
    %v350 = vperm.slane %v348, 0
    %v352 = vadd.f32 %v346, %v350
    %v353 = vadd.f32 %v347, %v350
    %v354 = vld [vmem:[%s5] sm:$0x1]
    %v356 = vperm.slane %v354, 0
    %v358 = vmul.f32 %v352, %v356
    %v359 = vmul.f32 %v353, %v356
    %v360 = vld [vmem:[%s6] sm:$0x1]
    %v362 = vperm.slane %v360, 0
    %v364 = vadd.f32 %v358, %v362
    %v365 = vadd.f32 %v359, %v362
    %v366 = vmax.f32 %v364, 0.0
    %v367 = vmax.f32 %v365, 0.0
    %v368 = vpack.c.bf16 %v366, %v366
    %v369 = vpack.c.bf16 %v367, %v367
    %v371 = vshrl.u32 %v368, 16
    %v373 = vrot.slane %v371, 7
    %v374 = vshll.u32 %v368, 16
    %v376 = vor.u32 %v373, %v374
    %v377 = vrot.slane %v373, 4
    %v379 = vshrl.u32 %v369, 16
    %v381 = vrot.slane %v379, 7
    %v382 = vshll.u32 %v369, 16
    %v384 = vor.u32 %v381, %v382
    %v385 = vsel %vm134, %v377, %v384
    %v386 = vrot.slane %v381, 4
    %vm390 = vcmask 1043456
    %vm391 = vmand %vm390, %vm101
    %v392 = vld [vmem:[#allocation3] sm:$0xf]
    %v393 = vsel %vm391, %v376, %v392
    %394 = vst [vmem:[#allocation3] sm:$0xf] %v393
    %395 = vst [vmem:[#allocation3 + $0x4] sm:$0xf] %v385
    %v396 = vld [vmem:[#allocation3 + $0x8] sm:$0x1]
    %v397 = vsel %vm107, %v386, %v396
    %398 = vst [vmem:[#allocation3 + $0x8] sm:$0x1] %v397
    %v399 = vld [vmem:[#allocation3] sm:$0xf]
    %v400 = vld [vmem:[#allocation3 + $0x4] sm:$0xf]
    %v401 = vld [vmem:[#allocation10] sm:$0xf]
    %v402 = vld [vmem:[#allocation10 + $0x4] sm:$0xf]
    %v403 = vld [vmem:[#allocation10 + $0x8] sm:$0xf]
    %v404 = vld [vmem:[#allocation10 + $0xc] sm:$0xf]
    %v405 = vld [vmem:[#allocation10 + $0x10] sm:$0xf]
    %v406 = vld [vmem:[#allocation10 + $0x14] sm:$0xf]
    %v407 = vld [vmem:[#allocation10 + $0x18] sm:$0xf]
    %v408 = vld [vmem:[#allocation10 + $0x1c] sm:$0xf]
    %v409 = vld [vmem:[#allocation10 + $0x20] sm:$0xf]
    %v410 = vld [vmem:[#allocation10 + $0x24] sm:$0xf]
    %v411 = vld [vmem:[#allocation10 + $0x28] sm:$0xf]
    %v412 = vld [vmem:[#allocation10 + $0x2c] sm:$0xf]
    %v413 = vld [vmem:[#allocation10 + $0x30] sm:$0xf]
    %v414 = vld [vmem:[#allocation10 + $0x34] sm:$0xf]
    %v415 = vld [vmem:[#allocation10 + $0x38] sm:$0xf]
    %v416 = vld [vmem:[#allocation10 + $0x3c] sm:$0xf]
    %v417 = vld [vmem:[#allocation3 + $0x8] sm:$0x1]
    %s418 = scalar_lea.vmem [#allocation10], 64
    %v419 = vld [vmem:[%s418] sm:$0xf]
    %v420 = vld [vmem:[%s418 + $0x4] sm:$0xf]
    %v421 = vld [vmem:[%s418 + $0x8] sm:$0xf]
    %v422 = vld [vmem:[%s418 + $0xc] sm:$0xf]
    %v423 = vld [vmem:[%s418 + $0x10] sm:$0xf]
    %v424 = vld [vmem:[%s418 + $0x14] sm:$0xf]
    %v425 = vld [vmem:[%s418 + $0x18] sm:$0xf]
    %v426 = vld [vmem:[%s418 + $0x1c] sm:$0xf]
    %v427 = vld [vmem:[%s418 + $0x20] sm:$0xf]
    %v428 = vld [vmem:[%s418 + $0x24] sm:$0xf]
    %v429 = vld [vmem:[%s418 + $0x28] sm:$0xf]
    %v430 = vld [vmem:[%s418 + $0x2c] sm:$0xf]
    %v431 = vld [vmem:[%s418 + $0x30] sm:$0xf]
    %v432 = vld [vmem:[%s418 + $0x34] sm:$0xf]
    %v433 = vld [vmem:[%s418 + $0x38] sm:$0xf]
    %v434 = vld [vmem:[%s418 + $0x3c] sm:$0xf]
    %v438 = vunpack.c.l.b16 %v399
    %v439 = vunpack.c.l.b16 %v400
    %v440 = vunpack.c.l.b16 %v417
    %v441 = vpack.c.b16 %v439, %v438
    %v442 = vpack.c.b16 %v440, %v440
    %v444 = vshrl.u32 %v441, 16
    %v446 = vshll.u32 %v441, 16
    %v448 = vrot.slane %v446, 1
    %v449 = vor.u32 %v444, %v448
    %v451 = vshll.u32 %v442, 16
    %v453 = vrot.slane %v451, 1
    %v454 = vsel %vm193, %v449, %v453
    %v472 = vunpack.c.l.b16 %v419
    %v473 = vunpack.c.l.b16 %v420
    %v474 = vunpack.c.l.b16 %v421
    %v475 = vunpack.c.l.b16 %v422
    %v476 = vunpack.c.l.b16 %v423
    %v477 = vunpack.c.l.b16 %v424
    %v478 = vunpack.c.l.b16 %v425
    %v479 = vunpack.c.l.b16 %v426
    %v480 = vunpack.c.l.b16 %v427
    %v481 = vunpack.c.l.b16 %v428
    %v482 = vunpack.c.l.b16 %v429
    %v483 = vunpack.c.l.b16 %v430
    %v484 = vunpack.c.l.b16 %v431
    %v485 = vunpack.c.l.b16 %v432
    %v486 = vunpack.c.l.b16 %v433
    %v487 = vunpack.c.l.b16 %v434
    %v488 = vpack.c.b16 %v473, %v472
    %v489 = vpack.c.b16 %v475, %v474
    %v490 = vpack.c.b16 %v477, %v476
    %v491 = vpack.c.b16 %v479, %v478
    %v492 = vpack.c.b16 %v481, %v480
    %v493 = vpack.c.b16 %v483, %v482
    %v494 = vpack.c.b16 %v485, %v484
    %v495 = vpack.c.b16 %v487, %v486
    %504 = vmatpush.bf16.msra.mxu0 %v495
    %505 = vmatpush.bf16.msra.mxu0 %v494
    %506 = vmatpush.bf16.msra.mxu0 %v493
    %507 = vmatpush.bf16.msra.mxu0 %v492
    %508 = vmatpush.bf16.msra.mxu0 %v491
    %509 = vmatpush.bf16.msra.mxu0 %v490
    %510 = vmatpush.bf16.msra.mxu0 %v489
    %511 = vmatpush.bf16.msra.mxu0 %v488
    %512 = vmatmul.bf16.gmra.mxu0 %v454
    %v513 = vpop.f32.mrf.mxu0
    %v514 = vadd.f32 0.0, %v513
    %v515 = vpop.f32.mrf.mxu0
    %v516 = vadd.f32 0.0, %v515
    %517 = vdwg.mxu0
    %v535 = vunpack.c.l.b16 %v401
    %v536 = vunpack.c.l.b16 %v402
    %v537 = vunpack.c.l.b16 %v403
    %v538 = vunpack.c.l.b16 %v404
    %v539 = vunpack.c.l.b16 %v405
    %v540 = vunpack.c.l.b16 %v406
    %v541 = vunpack.c.l.b16 %v407
    %v542 = vunpack.c.l.b16 %v408
    %v543 = vunpack.c.l.b16 %v409
    %v544 = vunpack.c.l.b16 %v410
    %v545 = vunpack.c.l.b16 %v411
    %v546 = vunpack.c.l.b16 %v412
    %v547 = vunpack.c.l.b16 %v413
    %v548 = vunpack.c.l.b16 %v414
    %v549 = vunpack.c.l.b16 %v415
    %v550 = vunpack.c.l.b16 %v416
    %v551 = vpack.c.b16 %v536, %v535
    %v552 = vpack.c.b16 %v538, %v537
    %v553 = vpack.c.b16 %v540, %v539
    %v554 = vpack.c.b16 %v542, %v541
    %v555 = vpack.c.b16 %v544, %v543
    %v556 = vpack.c.b16 %v546, %v545
    %v557 = vpack.c.b16 %v548, %v547
    %v558 = vpack.c.b16 %v550, %v549
    %567 = vmatpush.bf16.msra.mxu0 %v558
    %568 = vmatpush.bf16.msra.mxu0 %v557
    %569 = vmatpush.bf16.msra.mxu0 %v556
    %570 = vmatpush.bf16.msra.mxu0 %v555
    %571 = vmatpush.bf16.msra.mxu0 %v554
    %572 = vmatpush.bf16.msra.mxu0 %v553
    %573 = vmatpush.bf16.msra.mxu0 %v552
    %574 = vmatpush.bf16.msra.mxu0 %v551
    %575 = vmatmul.bf16.gmra.mxu0 %v441
    %v576 = vpop.f32.mrf.mxu0
    %v577 = vadd.f32 %v514, %v576
    %v578 = vpop.f32.mrf.mxu0
    %v579 = vadd.f32 %v516, %v578
    %580 = vdwg.mxu0
    %v581 = vld [vmem:[#allocation3] sm:$0xe]
    %s582 = scalar_lea.vmem [#allocation10], 128
    %v583 = vld [vmem:[%s582] sm:$0xf]
    %v584 = vld [vmem:[%s582 + $0x4] sm:$0xf]
    %v585 = vld [vmem:[%s582 + $0x8] sm:$0xf]
    %v586 = vld [vmem:[%s582 + $0xc] sm:$0xf]
    %v587 = vld [vmem:[%s582 + $0x10] sm:$0xf]
    %v588 = vld [vmem:[%s582 + $0x14] sm:$0xf]
    %v589 = vld [vmem:[%s582 + $0x18] sm:$0xf]
    %v590 = vld [vmem:[%s582 + $0x1c] sm:$0xf]
    %v591 = vld [vmem:[%s582 + $0x20] sm:$0xf]
    %v592 = vld [vmem:[%s582 + $0x24] sm:$0xf]
    %v593 = vld [vmem:[%s582 + $0x28] sm:$0xf]
    %v594 = vld [vmem:[%s582 + $0x2c] sm:$0xf]
    %v595 = vld [vmem:[%s582 + $0x30] sm:$0xf]
    %v596 = vld [vmem:[%s582 + $0x34] sm:$0xf]
    %v597 = vld [vmem:[%s582 + $0x38] sm:$0xf]
    %v598 = vld [vmem:[%s582 + $0x3c] sm:$0xf]
    %v600 = vunpack.c.l.b16 %v581
    %v601 = vpack.c.b16 %v439, %v600
    %v602 = vrot.slane %v601, 1
    %v603 = vrot.slane %v442, 1
    %v604 = vsel %vm301, %v602, %v603
    %v622 = vunpack.c.l.b16 %v583
    %v623 = vunpack.c.l.b16 %v584
    %v624 = vunpack.c.l.b16 %v585
    %v625 = vunpack.c.l.b16 %v586
    %v626 = vunpack.c.l.b16 %v587
    %v627 = vunpack.c.l.b16 %v588
    %v628 = vunpack.c.l.b16 %v589
    %v629 = vunpack.c.l.b16 %v590
    %v630 = vunpack.c.l.b16 %v591
    %v631 = vunpack.c.l.b16 %v592
    %v632 = vunpack.c.l.b16 %v593
    %v633 = vunpack.c.l.b16 %v594
    %v634 = vunpack.c.l.b16 %v595
    %v635 = vunpack.c.l.b16 %v596
    %v636 = vunpack.c.l.b16 %v597
    %v637 = vunpack.c.l.b16 %v598
    %v638 = vpack.c.b16 %v623, %v622
    %v639 = vpack.c.b16 %v625, %v624
    %v640 = vpack.c.b16 %v627, %v626
    %v641 = vpack.c.b16 %v629, %v628
    %v642 = vpack.c.b16 %v631, %v630
    %v643 = vpack.c.b16 %v633, %v632
    %v644 = vpack.c.b16 %v635, %v634
    %v645 = vpack.c.b16 %v637, %v636
    %654 = vmatpush.bf16.msra.mxu0 %v645
    %655 = vmatpush.bf16.msra.mxu0 %v644
    %656 = vmatpush.bf16.msra.mxu0 %v643
    %657 = vmatpush.bf16.msra.mxu0 %v642
    %658 = vmatpush.bf16.msra.mxu0 %v641
    %659 = vmatpush.bf16.msra.mxu0 %v640
    %660 = vmatpush.bf16.msra.mxu0 %v639
    %661 = vmatpush.bf16.msra.mxu0 %v638
    %662 = vmatmul.bf16.gmra.mxu0 %v604
    %v663 = vpop.f32.mrf.mxu0
    %v664 = vadd.f32 0.0, %v663
    %v665 = vpop.f32.mrf.mxu0
    %v666 = vadd.f32 0.0, %v665
    %667 = vdwg.mxu0
    %v668 = vadd.f32 %v577, %v664
    %v669 = vadd.f32 %v579, %v666
    %v670 = vld [vmem:[%s8] sm:$0x1]
    %v672 = vperm.slane %v670, 0
    %v674 = vadd.f32 %v668, %v672
    %v675 = vadd.f32 %v669, %v672
    %676 = vst [vmem:[#allocation12] sm:$0xff] %v674
    %677 = vst [vmem:[#allocation12 + $0x8] sm:$0xff] %v675
    %s678 = scalar_lea.vmem [#allocation4], 16
    %v679 = vld [vmem:[%s678] sm:$0xff]
    %v680 = vld [vmem:[%s678 + $0x8] sm:$0xff]
    %v681 = vld [vmem:[#allocation7] sm:$0x1]
    %v683 = vperm.slane %v681, 0
    %v685 = vmul.f32 %v679, %v683
    %v686 = vmul.f32 %v680, %v683
    %v687 = vld [vmem:[%s2] sm:$0x1]
    %v689 = vperm.slane %v687, 0
    %v691 = vadd.f32 %v685, %v689
    %v692 = vadd.f32 %v686, %v689
    %v693 = vmax.f32 %v691, 0.0
    %v694 = vmax.f32 %v692, 0.0
    %v695 = vpack.c.bf16 %v693, %v693
    %v696 = vpack.c.bf16 %v694, %v694
    %v698 = vshrl.u32 %v695, 16
    %v700 = vrot.slane %v698, 7
    %v701 = vshll.u32 %v695, 16
    %v703 = vor.u32 %v700, %v701
    %v704 = vrot.slane %v700, 4
    %v706 = vshrl.u32 %v696, 16
    %v708 = vrot.slane %v706, 7
    %v709 = vshll.u32 %v696, 16
    %v711 = vor.u32 %v708, %v709
    %v712 = vsel %vm134, %v704, %v711
    %v713 = vrot.slane %v708, 4
    %v717 = vld [vmem:[#allocation2] sm:$0xf]
    %v718 = vsel %vm156, %v703, %v717
    %719 = vst [vmem:[#allocation2] sm:$0xf] %v718
    %720 = vst.msk [vmem:[#allocation2 + $0x4] sm:$0xf] %vm160, %v712
    %v721 = vld [vmem:[#allocation2 + $0x8] sm:$0x1]
    %v722 = vsel %vm97, %v713, %v721
    %723 = vst [vmem:[#allocation2 + $0x8] sm:$0x1] %v722
    %v724 = vld [vmem:[#allocation2] sm:$0xf]
    %v725 = vld [vmem:[#allocation2 + $0x4] sm:$0xf]
    %v726 = vld [vmem:[#allocation9] sm:$0xf]
    %v727 = vld [vmem:[#allocation9 + $0x4] sm:$0xf]
    %v728 = vld [vmem:[#allocation9 + $0x8] sm:$0xf]
    %v729 = vld [vmem:[#allocation9 + $0xc] sm:$0xf]
    %v730 = vld [vmem:[#allocation9 + $0x10] sm:$0xf]
    %v731 = vld [vmem:[#allocation9 + $0x14] sm:$0xf]
    %v732 = vld [vmem:[#allocation9 + $0x18] sm:$0xf]
    %v733 = vld [vmem:[#allocation9 + $0x1c] sm:$0xf]
    %v734 = vld [vmem:[#allocation2 + $0x8] sm:$0x1]
    %v735 = vld [vmem:[%s176] sm:$0xf]
    %v736 = vld [vmem:[%s176 + $0x4] sm:$0xf]
    %v737 = vld [vmem:[%s176 + $0x8] sm:$0xf]
    %v738 = vld [vmem:[%s176 + $0xc] sm:$0xf]
    %v739 = vld [vmem:[%s176 + $0x10] sm:$0xf]
    %v740 = vld [vmem:[%s176 + $0x14] sm:$0xf]
    %v741 = vld [vmem:[%s176 + $0x18] sm:$0xf]
    %v742 = vld [vmem:[%s176 + $0x1c] sm:$0xf]
    %v746 = vunpack.c.l.b16 %v724
    %v747 = vunpack.c.l.b16 %v725
    %v748 = vunpack.c.l.b16 %v734
    %v749 = vpack.c.b16 %v747, %v746
    %v750 = vpack.c.b16 %v748, %v748
    %v752 = vshrl.u32 %v749, 16
    %v754 = vshll.u32 %v749, 16
    %v756 = vrot.slane %v754, 1
    %v757 = vor.u32 %v752, %v756
    %v759 = vshll.u32 %v750, 16
    %v761 = vrot.slane %v759, 1
    %v762 = vsel %vm193, %v757, %v761
    %v771 = vunpack.c.l.b16 %v735
    %v772 = vunpack.c.l.b16 %v736
    %v773 = vunpack.c.l.b16 %v737
    %v774 = vunpack.c.l.b16 %v738
    %v775 = vunpack.c.l.b16 %v739
    %v776 = vunpack.c.l.b16 %v740
    %v777 = vunpack.c.l.b16 %v741
    %v778 = vunpack.c.l.b16 %v742
    %v779 = vpack.c.b16 %v772, %v771
    %v780 = vpack.c.b16 %v774, %v773
    %v781 = vpack.c.b16 %v776, %v775
    %v782 = vpack.c.b16 %v778, %v777
    %v788 = vsel %vm230, %v762, 0
    %790 = vmatpush.bf16.msra.mxu0 0
    %791 = vmatpush.bf16.msra.mxu0 0
    %792 = vmatpush.bf16.msra.mxu0 0
    %793 = vmatpush.bf16.msra.mxu0 0
    %794 = vmatpush.bf16.msra.mxu0 %v782
    %795 = vmatpush.bf16.msra.mxu0 %v781
    %796 = vmatpush.bf16.msra.mxu0 %v780
    %797 = vmatpush.bf16.msra.mxu0 %v779
    %798 = vmatmul.bf16.gmra.mxu0 %v788
    %v799 = vpop.f32.mrf.mxu0
    %v800 = vadd.f32 0.0, %v799
    %v801 = vpop.f32.mrf.mxu0
    %v802 = vadd.f32 0.0, %v801
    %803 = vdwg.mxu0
    %v812 = vunpack.c.l.b16 %v726
    %v813 = vunpack.c.l.b16 %v727
    %v814 = vunpack.c.l.b16 %v728
    %v815 = vunpack.c.l.b16 %v729
    %v816 = vunpack.c.l.b16 %v730
    %v817 = vunpack.c.l.b16 %v731
    %v818 = vunpack.c.l.b16 %v732
    %v819 = vunpack.c.l.b16 %v733
    %v820 = vpack.c.b16 %v813, %v812
    %v821 = vpack.c.b16 %v815, %v814
    %v822 = vpack.c.b16 %v817, %v816
    %v823 = vpack.c.b16 %v819, %v818
    %v828 = vsel %vm230, %v749, 0
    %830 = vmatpush.bf16.msra.mxu0 0
    %831 = vmatpush.bf16.msra.mxu0 0
    %832 = vmatpush.bf16.msra.mxu0 0
    %833 = vmatpush.bf16.msra.mxu0 0
    %834 = vmatpush.bf16.msra.mxu0 %v823
    %835 = vmatpush.bf16.msra.mxu0 %v822
    %836 = vmatpush.bf16.msra.mxu0 %v821
    %837 = vmatpush.bf16.msra.mxu0 %v820
    %838 = vmatmul.bf16.gmra.mxu0 %v828
    %v839 = vpop.f32.mrf.mxu0
    %v840 = vadd.f32 %v800, %v839
    %v841 = vpop.f32.mrf.mxu0
    %v842 = vadd.f32 %v802, %v841
    %843 = vdwg.mxu0
    %v844 = vld [vmem:[#allocation2] sm:$0xe]
    %v845 = vld [vmem:[%s289] sm:$0xf]
    %v846 = vld [vmem:[%s289 + $0x4] sm:$0xf]
    %v847 = vld [vmem:[%s289 + $0x8] sm:$0xf]
    %v848 = vld [vmem:[%s289 + $0xc] sm:$0xf]
    %v849 = vld [vmem:[%s289 + $0x10] sm:$0xf]
    %v850 = vld [vmem:[%s289 + $0x14] sm:$0xf]
    %v851 = vld [vmem:[%s289 + $0x18] sm:$0xf]
    %v852 = vld [vmem:[%s289 + $0x1c] sm:$0xf]
    %v854 = vunpack.c.l.b16 %v844
    %v855 = vpack.c.b16 %v747, %v854
    %v856 = vrot.slane %v855, 1
    %v857 = vrot.slane %v750, 1
    %v858 = vsel %vm301, %v856, %v857
    %v867 = vunpack.c.l.b16 %v845
    %v868 = vunpack.c.l.b16 %v846
    %v869 = vunpack.c.l.b16 %v847
    %v870 = vunpack.c.l.b16 %v848
    %v871 = vunpack.c.l.b16 %v849
    %v872 = vunpack.c.l.b16 %v850
    %v873 = vunpack.c.l.b16 %v851
    %v874 = vunpack.c.l.b16 %v852
    %v875 = vpack.c.b16 %v868, %v867
    %v876 = vpack.c.b16 %v870, %v869
    %v877 = vpack.c.b16 %v872, %v871
    %v878 = vpack.c.b16 %v874, %v873
    %v884 = vsel %vm230, %v858, 0
    %886 = vmatpush.bf16.msra.mxu0 0
    %887 = vmatpush.bf16.msra.mxu0 0
    %888 = vmatpush.bf16.msra.mxu0 0
    %889 = vmatpush.bf16.msra.mxu0 0
    %890 = vmatpush.bf16.msra.mxu0 %v878
    %891 = vmatpush.bf16.msra.mxu0 %v877
    %892 = vmatpush.bf16.msra.mxu0 %v876
    %893 = vmatpush.bf16.msra.mxu0 %v875
    %894 = vmatmul.bf16.gmra.mxu0 %v884
    %v895 = vpop.f32.mrf.mxu0
    %v896 = vadd.f32 0.0, %v895
    %v897 = vpop.f32.mrf.mxu0
    %v898 = vadd.f32 0.0, %v897
    %899 = vdwg.mxu0
    %v900 = vadd.f32 %v840, %v896
    %v901 = vadd.f32 %v842, %v898
    %v902 = vld [vmem:[%s4] sm:$0x1]
    %v904 = vperm.slane %v902, 0
    %v906 = vadd.f32 %v900, %v904
    %v907 = vadd.f32 %v901, %v904
    %v908 = vld [vmem:[%s5] sm:$0x1]
    %v910 = vperm.slane %v908, 0
    %v912 = vmul.f32 %v906, %v910
    %v913 = vmul.f32 %v907, %v910
    %v914 = vld [vmem:[%s6] sm:$0x1]
    %v916 = vperm.slane %v914, 0
    %v918 = vadd.f32 %v912, %v916
    %v919 = vadd.f32 %v913, %v916
    %v920 = vmax.f32 %v918, 0.0
    %v921 = vmax.f32 %v919, 0.0
    %v922 = vpack.c.bf16 %v920, %v920
    %v923 = vpack.c.bf16 %v921, %v921
    %v925 = vshrl.u32 %v922, 16
    %v927 = vrot.slane %v925, 7
    %v928 = vshll.u32 %v922, 16
    %v930 = vor.u32 %v927, %v928
    %v931 = vrot.slane %v927, 4
    %v933 = vshrl.u32 %v923, 16
    %v935 = vrot.slane %v933, 7
    %v936 = vshll.u32 %v923, 16
    %v938 = vor.u32 %v935, %v936
    %v939 = vsel %vm134, %v931, %v938
    %v940 = vrot.slane %v935, 4
    %v944 = vld [vmem:[#allocation3] sm:$0xf]
    %v945 = vsel %vm391, %v930, %v944
    %946 = vst [vmem:[#allocation3] sm:$0xf] %v945
    %947 = vst [vmem:[#allocation3 + $0x4] sm:$0xf] %v939
    %v948 = vld [vmem:[#allocation3 + $0x8] sm:$0x1]
    %v949 = vsel %vm107, %v940, %v948
    %950 = vst [vmem:[#allocation3 + $0x8] sm:$0x1] %v949
    %v951 = vld [vmem:[#allocation3] sm:$0xf]
    %v952 = vld [vmem:[#allocation3 + $0x4] sm:$0xf]
    %v953 = vld [vmem:[#allocation10] sm:$0xf]
    %v954 = vld [vmem:[#allocation10 + $0x4] sm:$0xf]
    %v955 = vld [vmem:[#allocation10 + $0x8] sm:$0xf]
    %v956 = vld [vmem:[#allocation10 + $0xc] sm:$0xf]
    %v957 = vld [vmem:[#allocation10 + $0x10] sm:$0xf]
    %v958 = vld [vmem:[#allocation10 + $0x14] sm:$0xf]
    %v959 = vld [vmem:[#allocation10 + $0x18] sm:$0xf]
    %v960 = vld [vmem:[#allocation10 + $0x1c] sm:$0xf]
    %v961 = vld [vmem:[#allocation10 + $0x20] sm:$0xf]
    %v962 = vld [vmem:[#allocation10 + $0x24] sm:$0xf]
    %v963 = vld [vmem:[#allocation10 + $0x28] sm:$0xf]
    %v964 = vld [vmem:[#allocation10 + $0x2c] sm:$0xf]
    %v965 = vld [vmem:[#allocation10 + $0x30] sm:$0xf]
    %v966 = vld [vmem:[#allocation10 + $0x34] sm:$0xf]
    %v967 = vld [vmem:[#allocation10 + $0x38] sm:$0xf]
    %v968 = vld [vmem:[#allocation10 + $0x3c] sm:$0xf]
    %v969 = vld [vmem:[#allocation3 + $0x8] sm:$0x1]
    %v970 = vld [vmem:[%s418] sm:$0xf]
    %v971 = vld [vmem:[%s418 + $0x4] sm:$0xf]
    %v972 = vld [vmem:[%s418 + $0x8] sm:$0xf]
    %v973 = vld [vmem:[%s418 + $0xc] sm:$0xf]
    %v974 = vld [vmem:[%s418 + $0x10] sm:$0xf]
    %v975 = vld [vmem:[%s418 + $0x14] sm:$0xf]
    %v976 = vld [vmem:[%s418 + $0x18] sm:$0xf]
    %v977 = vld [vmem:[%s418 + $0x1c] sm:$0xf]
    %v978 = vld [vmem:[%s418 + $0x20] sm:$0xf]
    %v979 = vld [vmem:[%s418 + $0x24] sm:$0xf]
    %v980 = vld [vmem:[%s418 + $0x28] sm:$0xf]
    %v981 = vld [vmem:[%s418 + $0x2c] sm:$0xf]
    %v982 = vld [vmem:[%s418 + $0x30] sm:$0xf]
    %v983 = vld [vmem:[%s418 + $0x34] sm:$0xf]
    %v984 = vld [vmem:[%s418 + $0x38] sm:$0xf]
    %v985 = vld [vmem:[%s418 + $0x3c] sm:$0xf]
    %v989 = vunpack.c.l.b16 %v951
    %v990 = vunpack.c.l.b16 %v952
    %v991 = vunpack.c.l.b16 %v969
    %v992 = vpack.c.b16 %v990, %v989
    %v993 = vpack.c.b16 %v991, %v991
    %v995 = vshrl.u32 %v992, 16
    %v997 = vshll.u32 %v992, 16
    %v999 = vrot.slane %v997, 1
    %v1000 = vor.u32 %v995, %v999
    %v1002 = vshll.u32 %v993, 16
    %v1004 = vrot.slane %v1002, 1
    %v1005 = vsel %vm193, %v1000, %v1004
    %v1023 = vunpack.c.l.b16 %v970
    %v1024 = vunpack.c.l.b16 %v971
    %v1025 = vunpack.c.l.b16 %v972
    %v1026 = vunpack.c.l.b16 %v973
    %v1027 = vunpack.c.l.b16 %v974
    %v1028 = vunpack.c.l.b16 %v975
    %v1029 = vunpack.c.l.b16 %v976
    %v1030 = vunpack.c.l.b16 %v977
    %v1031 = vunpack.c.l.b16 %v978
    %v1032 = vunpack.c.l.b16 %v979
    %v1033 = vunpack.c.l.b16 %v980
    %v1034 = vunpack.c.l.b16 %v981
    %v1035 = vunpack.c.l.b16 %v982
    %v1036 = vunpack.c.l.b16 %v983
    %v1037 = vunpack.c.l.b16 %v984
    %v1038 = vunpack.c.l.b16 %v985
    %v1039 = vpack.c.b16 %v1024, %v1023
    %v1040 = vpack.c.b16 %v1026, %v1025
    %v1041 = vpack.c.b16 %v1028, %v1027
    %v1042 = vpack.c.b16 %v1030, %v1029
    %v1043 = vpack.c.b16 %v1032, %v1031
    %v1044 = vpack.c.b16 %v1034, %v1033
    %v1045 = vpack.c.b16 %v1036, %v1035
    %v1046 = vpack.c.b16 %v1038, %v1037
    %1055 = vmatpush.bf16.msra.mxu0 %v1046
    %1056 = vmatpush.bf16.msra.mxu0 %v1045
    %1057 = vmatpush.bf16.msra.mxu0 %v1044
    %1058 = vmatpush.bf16.msra.mxu0 %v1043
    %1059 = vmatpush.bf16.msra.mxu0 %v1042
    %1060 = vmatpush.bf16.msra.mxu0 %v1041
    %1061 = vmatpush.bf16.msra.mxu0 %v1040
    %1062 = vmatpush.bf16.msra.mxu0 %v1039
    %1063 = vmatmul.bf16.gmra.mxu0 %v1005
    %v1064 = vpop.f32.mrf.mxu0
    %v1065 = vadd.f32 0.0, %v1064
    %v1066 = vpop.f32.mrf.mxu0
    %v1067 = vadd.f32 0.0, %v1066
    %1068 = vdwg.mxu0
    %v1086 = vunpack.c.l.b16 %v953
    %v1087 = vunpack.c.l.b16 %v954
    %v1088 = vunpack.c.l.b16 %v955
    %v1089 = vunpack.c.l.b16 %v956
    %v1090 = vunpack.c.l.b16 %v957
    %v1091 = vunpack.c.l.b16 %v958
    %v1092 = vunpack.c.l.b16 %v959
    %v1093 = vunpack.c.l.b16 %v960
    %v1094 = vunpack.c.l.b16 %v961
    %v1095 = vunpack.c.l.b16 %v962
    %v1096 = vunpack.c.l.b16 %v963
    %v1097 = vunpack.c.l.b16 %v964
    %v1098 = vunpack.c.l.b16 %v965
    %v1099 = vunpack.c.l.b16 %v966
    %v1100 = vunpack.c.l.b16 %v967
    %v1101 = vunpack.c.l.b16 %v968
    %v1102 = vpack.c.b16 %v1087, %v1086
    %v1103 = vpack.c.b16 %v1089, %v1088
    %v1104 = vpack.c.b16 %v1091, %v1090
    %v1105 = vpack.c.b16 %v1093, %v1092
    %v1106 = vpack.c.b16 %v1095, %v1094
    %v1107 = vpack.c.b16 %v1097, %v1096
    %v1108 = vpack.c.b16 %v1099, %v1098
    %v1109 = vpack.c.b16 %v1101, %v1100
    %1118 = vmatpush.bf16.msra.mxu0 %v1109
    %1119 = vmatpush.bf16.msra.mxu0 %v1108
    %1120 = vmatpush.bf16.msra.mxu0 %v1107
    %1121 = vmatpush.bf16.msra.mxu0 %v1106
    %1122 = vmatpush.bf16.msra.mxu0 %v1105
    %1123 = vmatpush.bf16.msra.mxu0 %v1104
    %1124 = vmatpush.bf16.msra.mxu0 %v1103
    %1125 = vmatpush.bf16.msra.mxu0 %v1102
    %1126 = vmatmul.bf16.gmra.mxu0 %v992
    %v1127 = vpop.f32.mrf.mxu0
    %v1128 = vadd.f32 %v1065, %v1127
    %v1129 = vpop.f32.mrf.mxu0
    %v1130 = vadd.f32 %v1067, %v1129
    %1131 = vdwg.mxu0
    %v1132 = vld [vmem:[#allocation3] sm:$0xe]
    %v1133 = vld [vmem:[%s582] sm:$0xf]
    %v1134 = vld [vmem:[%s582 + $0x4] sm:$0xf]
    %v1135 = vld [vmem:[%s582 + $0x8] sm:$0xf]
    %v1136 = vld [vmem:[%s582 + $0xc] sm:$0xf]
    %v1137 = vld [vmem:[%s582 + $0x10] sm:$0xf]
    %v1138 = vld [vmem:[%s582 + $0x14] sm:$0xf]
    %v1139 = vld [vmem:[%s582 + $0x18] sm:$0xf]
    %v1140 = vld [vmem:[%s582 + $0x1c] sm:$0xf]
    %v1141 = vld [vmem:[%s582 + $0x20] sm:$0xf]
    %v1142 = vld [vmem:[%s582 + $0x24] sm:$0xf]
    %v1143 = vld [vmem:[%s582 + $0x28] sm:$0xf]
    %v1144 = vld [vmem:[%s582 + $0x2c] sm:$0xf]
    %v1145 = vld [vmem:[%s582 + $0x30] sm:$0xf]
    %v1146 = vld [vmem:[%s582 + $0x34] sm:$0xf]
    %v1147 = vld [vmem:[%s582 + $0x38] sm:$0xf]
    %v1148 = vld [vmem:[%s582 + $0x3c] sm:$0xf]
    %v1150 = vunpack.c.l.b16 %v1132
    %v1151 = vpack.c.b16 %v990, %v1150
    %v1152 = vrot.slane %v1151, 1
    %v1153 = vrot.slane %v993, 1
    %v1154 = vsel %vm301, %v1152, %v1153
    %v1172 = vunpack.c.l.b16 %v1133
    %v1173 = vunpack.c.l.b16 %v1134
    %v1174 = vunpack.c.l.b16 %v1135
    %v1175 = vunpack.c.l.b16 %v1136
    %v1176 = vunpack.c.l.b16 %v1137
    %v1177 = vunpack.c.l.b16 %v1138
    %v1178 = vunpack.c.l.b16 %v1139
    %v1179 = vunpack.c.l.b16 %v1140
    %v1180 = vunpack.c.l.b16 %v1141
    %v1181 = vunpack.c.l.b16 %v1142
    %v1182 = vunpack.c.l.b16 %v1143
    %v1183 = vunpack.c.l.b16 %v1144
    %v1184 = vunpack.c.l.b16 %v1145
    %v1185 = vunpack.c.l.b16 %v1146
    %v1186 = vunpack.c.l.b16 %v1147
    %v1187 = vunpack.c.l.b16 %v1148
    %v1188 = vpack.c.b16 %v1173, %v1172
    %v1189 = vpack.c.b16 %v1175, %v1174
    %v1190 = vpack.c.b16 %v1177, %v1176
    %v1191 = vpack.c.b16 %v1179, %v1178
    %v1192 = vpack.c.b16 %v1181, %v1180
    %v1193 = vpack.c.b16 %v1183, %v1182
    %v1194 = vpack.c.b16 %v1185, %v1184
    %v1195 = vpack.c.b16 %v1187, %v1186
    %1204 = vmatpush.bf16.msra.mxu0 %v1195
    %1205 = vmatpush.bf16.msra.mxu0 %v1194
    %1206 = vmatpush.bf16.msra.mxu0 %v1193
    %1207 = vmatpush.bf16.msra.mxu0 %v1192
    %1208 = vmatpush.bf16.msra.mxu0 %v1191
    %1209 = vmatpush.bf16.msra.mxu0 %v1190
    %1210 = vmatpush.bf16.msra.mxu0 %v1189
    %1211 = vmatpush.bf16.msra.mxu0 %v1188
    %1212 = vmatmul.bf16.gmra.mxu0 %v1154
    %v1213 = vpop.f32.mrf.mxu0
    %v1214 = vadd.f32 0.0, %v1213
    %v1215 = vpop.f32.mrf.mxu0
    %v1216 = vadd.f32 0.0, %v1215
    %1217 = vdwg.mxu0
    %v1218 = vadd.f32 %v1128, %v1214
    %v1219 = vadd.f32 %v1130, %v1216
    %v1220 = vld [vmem:[%s8] sm:$0x1]
    %v1222 = vperm.slane %v1220, 0
    %v1224 = vadd.f32 %v1218, %v1222
    %v1225 = vadd.f32 %v1219, %v1222
    %s1226 = scalar_lea.vmem [#allocation12], 16
    %1227 = vst [vmem:[%s1226] sm:$0xff] %v1224
    %1228 = vst [vmem:[%s1226 + $0x8] sm:$0xff] %v1225
    // Predicated region
    $region54: #{tpu_custom_call.1} parent=1 // pred_check
      _
    $region55: #{tpu_custom_call.1} parent=1 // pred_check_branch
      %1230 = sbr.rel (0) target = $region57
    $region56: #{tpu_custom_call.1} parent=1 // pred_region
      %1232 = vsyncadd [#allocation6], 0
      %s1233 = sshll.u32 [#allocation12], 4
      %s1234 = int_to_ptr.vmem [resolvable:$true] %s1233
      %s1235 = sshll.u32 %s9, 4
      %s1236 = int_to_ptr.hbm [resolvable:$true] %s1235
      %1241 = dma.vmem_to_hbm [thread:$0]  %s1234, 512, %s1236, [#allocation6], 128, 128, 8
    $region57: #{tpu_custom_call.1} parent=1 // pred_fallthru
      _
    // Predicated region
    $region58: #{tpu_custom_call.1} parent=1 // pred_check
      _
    $region59: #{tpu_custom_call.1} parent=1 // pred_check_branch
      %1243 = sbr.rel (0) target = $region61
    $region60: #{tpu_custom_call.1} parent=1 // pred_region
      %1245 = dma.done [#allocation6], 512
    $region61: #{tpu_custom_call.1} parent=1 // pred_fallthru
      _
    %1246 = vsyncpa [#allocation5], 1
    %1247 = vsyncpa [#allocation8], 1
    %1248 = vsyncpa [#allocation11], 1
    %1249 = vsyncpa [#allocation6], 1

</llo_original>
